<compile_context>
chip_gen: v7x
topology: tpu7x:2x2x1
jax: 0.10.0
libtpu: 0.0.40
codegen_flags: <defaults>
</compile_context>

<pallas_src>
import functools

import jax
import jax.numpy as jnp
from jax import lax
from jax.experimental import pallas as pl
from jax.experimental.pallas import tpu as pltpu

H = 128               # hidden_dim (module default; kernel assumes 128)
GATES = 3 * H         # kept gates per direction: [i, g, o]
BN_EPS = 1e-5


def _sigmoid(v):
    # sigmoid(x) == 0.5 * tanh(0.5 * x) + 0.5  (exact): one EUP transcendental
    # instead of exp + reciprocal -> fewer pushes on the single EUP unit.
    return 0.5 * jnp.tanh(0.5 * v) + 0.5


def _lstm_classifier_kernel(
    x_ref,                          # (TB, D)          f32
    w0_ref, b0_ref,                 # (D, 6H) bf16,    (1, 6H) f32    layer-0 fwd|rev
    w1f_ref, w1r_ref, b1_ref,       # (H, 6H) bf16 x2, (1, 6H) f32    layer-1 fwd|rev
    wf1f_ref, wf1r_ref, bf1_ref,    # (H, 128) bf16 x2,(1, 128) f32   fc1 (+BN), padded
    wf2_ref, bf2_ref,               # (128,128) bf16,  (1, 128) f32   fc2, padded (+1-lane)
    wf3_ref,                        # (1, 128) f32                    fc3 row (+bias lane)
    out_ref,                        # (1, 1, TB)       f32            lane-dense prob row
):
    def lstm_cell(gates):
        # gates: (TB, 3H) ordered [i, g, o]; forget gate dropped since c0 == 0.
        i = _sigmoid(gates[:, 0:H])
        g = jnp.tanh(gates[:, H:2 * H])
        o = _sigmoid(gates[:, 2 * H:3 * H])
        return (o * jnp.tanh(i * g)).astype(jnp.bfloat16)

    def split_dirs(gates):          # (TB, 6H) -> fwd (TB,H), rev (TB,H) in bf16
        return lstm_cell(gates[:, 0:GATES]), lstm_cell(gates[:, GATES:2 * GATES])

    x = x_ref[...].astype(jnp.bfloat16)      # single cast, no f32 round trip

    # ----- LSTM layer 0 (one time step, h0 = c0 = 0) -----
    g0 = jnp.dot(x, w0_ref[...], preferred_element_type=jnp.float32) + b0_ref[...]
    hf0, hr0 = split_dirs(g0)

    # ----- LSTM layer 1: split fwd/rev weights avoid the (TB, 2H) concat copy -----
    g1 = (jnp.dot(hf0, w1f_ref[...], preferred_element_type=jnp.float32)
          + jnp.dot(hr0, w1r_ref[...], preferred_element_type=jnp.float32)
          + b1_ref[...])
    hf1, hr1 = split_dirs(g1)                # == cat(hidden[-2], hidden[-1]) halves

    # ----- fc1 + folded eval-mode BatchNorm + ReLU (64 real lanes, padded to 128) -----
    z = (jnp.dot(hf1, wf1f_ref[...], preferred_element_type=jnp.float32)
         + jnp.dot(hr1, wf1r_ref[...], preferred_element_type=jnp.float32)
         + bf1_ref[...])
    z = jnp.maximum(z, 0.0)                  # Dropout(0.3): identity in eval

    # ----- fc2 + ReLU (16 real lanes; lane 16 carries a constant 1.0 for fc3 bias) -----
    z = jnp.dot(z.astype(jnp.bfloat16), wf2_ref[...],
                preferred_element_type=jnp.float32) + bf2_ref[...]
    z = jnp.maximum(z, 0.0)                  # Dropout(0.3): identity in eval

    # ----- fc3 (16 -> 1) + sigmoid, produced directly as a lane-dense row -----
    # wf3 (1,128) . z^T (128,TB) -> (1,TB): no (TB,1) column, no transpose; fc3
    # bias is pre-folded into wf3[0,16] against the constant-1 lane of z.
    logit = lax.dot_general(wf3_ref[...], z, (((1,), (1,)), ((), ())),
                            preferred_element_type=jnp.float32)       # (1, TB)
    out_ref[0] = _sigmoid(logit)


def _round_up(n, m):
    return ((n + m - 1) // m) * m


def _cdiv(a, b):
    return (a + b - 1) // b


@functools.partial(jax.jit, static_argnames=("tile_b",))
def lstm_binary_classifier(x, params, *, tile_b=1024):
    """x: (B, D) float32; params: tuple from prepare_params(). Returns (B, 1) f32."""
    B, D = x.shape

    # Balanced batch tiling: tiles are multiples of 8 rows, capped at tile_b,
    # sized to minimise padding waste, and >= 2 grid steps once the batch is
    # large enough so both v7x TensorCores get work.
    num_tiles = max(1, _cdiv(B, tile_b))
    if B >= 256:
        num_tiles = max(num_tiles, 2)
    tb = _round_up(_cdiv(B, num_tiles), 8)
    B_pad = tb * num_tiles
    if B_pad != B:
        x = jnp.pad(x, ((0, B_pad - B), (0, 0)))
    grid = (num_tiles,)

    in_specs = [pl.BlockSpec((tb, D), lambda i: (i, 0))]
    # Weights: full-array blocks with a constant index_map -> resident in VMEM.
    in_specs += [pl.BlockSpec(p.shape, lambda i: (0, 0)) for p in params]
    # Lane-dense packed output: one (1, tb) probability row per grid step.
    out_specs = pl.BlockSpec((1, 1, tb), lambda i: (i, 0, 0))

    param_bytes = sum(int(p.size) * p.dtype.itemsize for p in params)
    io_bytes = 2 * (tb * D * 4) + 2 * (tb * 4)     # double-buffered in/out tiles
    scratch_bytes = tb * 12 * 1024                 # gates / hidden states / fc activations
    vmem_limit = int(min(64 * 2 ** 20,
                         max(16 * 2 ** 20,
                             param_bytes + io_bytes + scratch_bytes + (4 << 20))))

    flops = 2 * B_pad * (D * 2 * GATES + 2 * H * 2 * GATES
                         + 2 * H * 128 + 128 * 128 + 128)
    transcendentals = B_pad * (16 * H + 1)
    bytes_accessed = B_pad * D * 4 + B_pad * 4 + param_bytes

    out = pl.pallas_call(
        _lstm_classifier_kernel,
        out_shape=jax.ShapeDtypeStruct((num_tiles, 1, tb), jnp.float32),
        grid_spec=pl.GridSpec(grid=grid, in_specs=in_specs, out_specs=out_specs),
        compiler_params=pltpu.CompilerParams(
            dimension_semantics=("parallel",),
            vmem_limit_bytes=vmem_limit),
        cost_estimate=pl.CostEstimate(flops=flops,
                                      transcendentals=transcendentals,
                                      bytes_accessed=bytes_accessed),
    )(x, *params)
    # (num_tiles, 1, tb) -> row-major flatten preserves batch order: i*tb + j.
    return out.reshape(B_pad, 1)[:B]


def init_torch_params(key, input_dim, hidden_dim=128):
    """PyTorch-shaped LSTMBinaryClassifier parameters (fresh-init eval model)."""
    assert hidden_dim == H
    bound = 1.0 / float(hidden_dim) ** 0.5
    keys = iter(jax.random.split(key, 32))

    def uni(shape, b):
        return jax.random.uniform(next(keys), shape, jnp.float32, -b, b)

    p = {}
    # nn.LSTM: per (layer, direction) W_ih (4H,in), W_hh (4H,H), b_ih, b_hh (4H,)
    for layer, in_dim in ((0, input_dim), (1, 2 * hidden_dim)):
        for suffix in ("", "_reverse"):
            name = f"l{layer}{suffix}"
            p[f"w_ih_{name}"] = uni((4 * hidden_dim, in_dim), bound)
            p[f"w_hh_{name}"] = uni((4 * hidden_dim, hidden_dim), bound)  # unused: h0 == 0
            p[f"b_ih_{name}"] = uni((4 * hidden_dim,), bound)
            p[f"b_hh_{name}"] = uni((4 * hidden_dim,), bound)
    # fc head: Linear(256,64) -> BN(64) -> ReLU -> Linear(64,16) -> ReLU -> Linear(16,1)
    b1 = 1.0 / float(2 * hidden_dim) ** 0.5
    p["w_fc1"] = uni((64, 2 * hidden_dim), b1)
    p["b_fc1"] = uni((64,), b1)
    p["bn_gamma"] = jnp.ones((64,), jnp.float32)
    p["bn_beta"] = jnp.zeros((64,), jnp.float32)
    p["bn_mean"] = jnp.zeros((64,), jnp.float32)
    p["bn_var"] = jnp.ones((64,), jnp.float32)
    b2 = 1.0 / 64.0 ** 0.5
    p["w_fc2"] = uni((16, 64), b2)
    p["b_fc2"] = uni((16,), b2)
    b3 = 1.0 / 16.0 ** 0.5
    p["w_fc3"] = uni((1, 16), b3)
    p["b_fc3"] = uni((1,), b3)
    return p


_KEPT_GATES = (0, 2, 3)     # PyTorch order [i, f, g, o]; forget drops (f * c0 == 0)


def prepare_params(raw, mxu_dtype=jnp.bfloat16):
    """Fold/pad PyTorch-shaped params into the kernel's MXU-friendly layout."""
    def direction(name):
        w = raw[f"w_ih_{name}"]                                      # (4H, in)
        b = raw[f"b_ih_{name}"] + raw[f"b_hh_{name}"]                # (4H,)  W_hh dropped: h0 == 0
        w = jnp.concatenate([w[g * H:(g + 1) * H] for g in _KEPT_GATES], 0)
        b = jnp.concatenate([b[g * H:(g + 1) * H] for g in _KEPT_GATES], 0)
        return w.T, b                                                # (in, 3H), (3H,)

    def layer(lidx):
        wf, bf = direction(f"l{lidx}")
        wr, br = direction(f"l{lidx}_reverse")
        w = jnp.concatenate([wf, wr], axis=1)                        # (in, 6H)
        b = jnp.concatenate([bf, br])[None, :]                       # (1, 6H)
        return w.astype(mxu_dtype), b

    w0, b0 = layer(0)                                                # (D, 6H)
    w1, b1 = layer(1)                                                # (2H, 6H)
    w1f, w1r = w1[:H], w1[H:]                                        # rows for h_fwd0 / h_rev0

    # fc1 with eval-mode BatchNorm folded in, zero-padded 64 -> 128 lanes, split
    # into the row blocks that multiply h_fwd1 / h_rev1 (no concat in the kernel).
    scale = raw["bn_gamma"] * jax.lax.rsqrt(raw["bn_var"] + BN_EPS)          # (64,)
    wf1 = raw["w_fc1"].T * scale[None, :]                                    # (256, 64)
    bf1 = (raw["b_fc1"] - raw["bn_mean"]) * scale + raw["bn_beta"]           # (64,)
    wf1 = jnp.pad(wf1, ((0, 0), (0, 64))).astype(mxu_dtype)                  # (256, 128)
    bf1 = jnp.pad(bf1, (0, 64))[None, :]                                     # (1, 128)
    wf1f, wf1r = wf1[:H], wf1[H:]

    # fc2 zero-padded (64,16) -> (128,128): padded rows/cols contribute zero.
    # Padded lane 16 of the bias is set to 1.0 -> after ReLU the fc2 output has a
    # constant-1 lane that carries the fc3 bias through the lane-reduce row.
    wf2 = jnp.pad(raw["w_fc2"].T, ((0, 64), (0, 112))).astype(mxu_dtype)     # (128, 128)
    bf2 = jnp.pad(raw["b_fc2"], (0, 112)).at[16].set(1.0)[None, :]           # (1, 128)

    # fc3 as a padded f32 row; its bias folded into lane 16 (constant-1 lane).
    wf3 = jnp.pad(raw["w_fc3"], ((0, 0), (0, 112)))                          # (1, 128)
    wf3 = wf3.at[0, 16].set(raw["b_fc3"][0])

    return (w0, b0, w1f, w1r, b1, wf1f, wf1r, bf1, wf2, bf2, wf3)


def reference_forward(x, raw):
    """Pure-JAX f32 reference matching the PyTorch module in eval mode."""
    def cell(inp, name):
        gates = inp @ raw[f"w_ih_{name}"].T + raw[f"b_ih_{name}"] + raw[f"b_hh_{name}"]
        i, f, g, o = jnp.split(gates, 4, axis=-1)
        c = jax.nn.sigmoid(i) * jnp.tanh(g)          # f * c0 == 0
        return jax.nn.sigmoid(o) * jnp.tanh(c)

    out0 = jnp.concatenate([cell(x, "l0"), cell(x, "l0_reverse")], axis=-1)
    hid = jnp.concatenate([cell(out0, "l1"), cell(out0, "l1_reverse")], axis=-1)
    z = hid @ raw["w_fc1"].T + raw["b_fc1"]
    z = (z - raw["bn_mean"]) * jax.lax.rsqrt(raw["bn_var"] + BN_EPS) \
        * raw["bn_gamma"] + raw["bn_beta"]
    z = jnp.maximum(z, 0.0)
    z = jnp.maximum(z @ raw["w_fc2"].T + raw["b_fc2"], 0.0)
    z = z @ raw["w_fc3"].T + raw["b_fc3"]
    return jax.nn.sigmoid(z)


if __name__ == "__main__":
    key = jax.random.PRNGKey(0)
    kx, kx2, kp = jax.random.split(key, 3)

    INPUT_DIM = 32   # small synthetic stand-in for the ViT embedding dim
    raw = init_torch_params(kp, INPUT_DIM, hidden_dim=H)
    params = prepare_params(raw)

    # Small single-tile batch.
    B = 8
    x = jax.random.normal(kx, (B, INPUT_DIM), jnp.float32)
    out = jax.block_until_ready(lstm_binary_classifier(x, params))
    assert out.shape == (B, 1)
    assert bool(jnp.all(jnp.isfinite(out)))
    assert bool(jnp.all((out >= 0.0) & (out <= 1.0)))
    ref = reference_forward(x, raw)
    max_err = float(jnp.max(jnp.abs(out - ref)))
    assert max_err < 5e-2, f"kernel/reference mismatch: {max_err}"

    # Multi-tile batch: exercises the lane-packed output across >= 2 grid steps
    # and verifies the batch-row -> output-lane index mapping row by row.
    B2 = 260
    x2 = jax.random.normal(kx2, (B2, INPUT_DIM), jnp.float32)
    out2 = jax.block_until_ready(lstm_binary_classifier(x2, params))
    assert out2.shape == (B2, 1)
    ref2 = reference_forward(x2, raw)
    max_err2 = float(jnp.max(jnp.abs(out2 - ref2)))
    assert max_err2 < 5e-2, f"multi-tile kernel/reference mismatch: {max_err2}"

    print("KERNEL_OK")
</pallas_src>

<mosaic_0001>
module attributes {stable_mosaic.version = 11 : i64} {
  func.func @_lstm_classifier_kernel(%arg0: i32, %arg1: memref<8x32xf32, #tpu.memory_space<vmem>>, %arg2: memref<32x768xbf16, #tpu.memory_space<vmem>>, %arg3: memref<1x768xf32, #tpu.memory_space<vmem>>, %arg4: memref<128x768xbf16, #tpu.memory_space<vmem>>, %arg5: memref<128x768xbf16, #tpu.memory_space<vmem>>, %arg6: memref<1x768xf32, #tpu.memory_space<vmem>>, %arg7: memref<128x128xbf16, #tpu.memory_space<vmem>>, %arg8: memref<128x128xbf16, #tpu.memory_space<vmem>>, %arg9: memref<1x128xf32, #tpu.memory_space<vmem>>, %arg10: memref<128x128xbf16, #tpu.memory_space<vmem>>, %arg11: memref<1x128xf32, #tpu.memory_space<vmem>>, %arg12: memref<1x128xf32, #tpu.memory_space<vmem>>, %arg13: memref<1x1x8xf32, #tpu.memory_space<vmem>>) attributes {dimension_semantics = [#tpu.dimension_semantics<parallel>], iteration_bounds = array<i64: 1>, scalar_prefetch = 0 : i64, scratch_operands = 0 : i64, tpu.core_type = #tpu.core_type<tc>, window_params = [{transform_indices = @transform_0, window_bounds = array<i64: 8, 32>}, {pipeline_mode = #tpu.pipeline_mode<synchronous>, transform_indices = @transform_1, window_bounds = array<i64: 32, 768>}, {pipeline_mode = #tpu.pipeline_mode<synchronous>, transform_indices = @transform_2, window_bounds = array<i64: 1, 768>}, {pipeline_mode = #tpu.pipeline_mode<synchronous>, transform_indices = @transform_3, window_bounds = array<i64: 128, 768>}, {pipeline_mode = #tpu.pipeline_mode<synchronous>, transform_indices = @transform_4, window_bounds = array<i64: 128, 768>}, {pipeline_mode = #tpu.pipeline_mode<synchronous>, transform_indices = @transform_5, window_bounds = array<i64: 1, 768>}, {pipeline_mode = #tpu.pipeline_mode<synchronous>, transform_indices = @transform_6, window_bounds = array<i64: 128, 128>}, {pipeline_mode = #tpu.pipeline_mode<synchronous>, transform_indices = @transform_7, window_bounds = array<i64: 128, 128>}, {pipeline_mode = #tpu.pipeline_mode<synchronous>, transform_indices = @transform_8, window_bounds = array<i64: 1, 128>}, {pipeline_mode = #tpu.pipeline_mode<synchronous>, transform_indices = @transform_9, window_bounds = array<i64: 128, 128>}, {pipeline_mode = #tpu.pipeline_mode<synchronous>, transform_indices = @transform_10, window_bounds = array<i64: 1, 128>}, {pipeline_mode = #tpu.pipeline_mode<synchronous>, transform_indices = @transform_11, window_bounds = array<i64: 1, 128>}, {transform_indices = @transform_12, window_bounds = array<i64: 1, 1, 8>}]} {
    %c0 = arith.constant 0 : index
    %c0_0 = arith.constant 0 : index
    %0 = vector.load %arg1[%c0, %c0_0] : memref<8x32xf32, #tpu.memory_space<vmem>>, vector<8x32xf32>
    %1 = arith.truncf %0 : vector<8x32xf32> to vector<8x32xbf16>
    %c0_1 = arith.constant 0 : index
    %c0_2 = arith.constant 0 : index
    %2 = vector.load %arg2[%c0_1, %c0_2] : memref<32x768xbf16, #tpu.memory_space<vmem>>, vector<32x768xbf16>
    %cst = arith.constant dense<0.000000e+00> : vector<8x768xf32>
    %3 = tpu.matmul %1, %2, %cst {dimension_numbers = #tpu.dot_dimension_numbers<[1], [0], [0], [1], [0, 0, 1, 1], [], []>} : vector<8x32xbf16>, vector<32x768xbf16>, vector<8x768xf32> -> vector<8x768xf32>
    %c0_3 = arith.constant 0 : index
    %c0_4 = arith.constant 0 : index
    %4 = vector.load %arg3[%c0_3, %c0_4] : memref<1x768xf32, #tpu.memory_space<vmem>>, vector<1x768xf32>
    %5 = vector.broadcast %4 : vector<1x768xf32> to vector<8x768xf32>
    %6 = arith.addf %3, %5 : vector<8x768xf32>
    %7 = vector.extract_strided_slice %6 {offsets = [0, 0], sizes = [8, 384], strides = [1, 1]} : vector<8x768xf32> to vector<8x384xf32>
    %8 = vector.extract_strided_slice %7 {offsets = [0, 0], sizes = [8, 128], strides = [1, 1]} : vector<8x384xf32> to vector<8x128xf32>
    %cst_5 = arith.constant 5.000000e-01 : f32
    %9 = vector.broadcast %cst_5 : f32 to vector<8x128xf32>
    %10 = arith.mulf %9, %8 : vector<8x128xf32>
    %11 = math.tanh %10 : vector<8x128xf32>
    %cst_6 = arith.constant 5.000000e-01 : f32
    %12 = vector.broadcast %cst_6 : f32 to vector<8x128xf32>
    %13 = arith.mulf %12, %11 : vector<8x128xf32>
    %cst_7 = arith.constant 5.000000e-01 : f32
    %14 = vector.broadcast %cst_7 : f32 to vector<8x128xf32>
    %15 = arith.addf %13, %14 : vector<8x128xf32>
    %16 = vector.extract_strided_slice %7 {offsets = [0, 128], sizes = [8, 128], strides = [1, 1]} : vector<8x384xf32> to vector<8x128xf32>
    %17 = math.tanh %16 : vector<8x128xf32>
    %18 = vector.extract_strided_slice %7 {offsets = [0, 256], sizes = [8, 128], strides = [1, 1]} : vector<8x384xf32> to vector<8x128xf32>
    %cst_8 = arith.constant 5.000000e-01 : f32
    %19 = vector.broadcast %cst_8 : f32 to vector<8x128xf32>
    %20 = arith.mulf %19, %18 : vector<8x128xf32>
    %21 = math.tanh %20 : vector<8x128xf32>
    %cst_9 = arith.constant 5.000000e-01 : f32
    %22 = vector.broadcast %cst_9 : f32 to vector<8x128xf32>
    %23 = arith.mulf %22, %21 : vector<8x128xf32>
    %cst_10 = arith.constant 5.000000e-01 : f32
    %24 = vector.broadcast %cst_10 : f32 to vector<8x128xf32>
    %25 = arith.addf %23, %24 : vector<8x128xf32>
    %26 = arith.mulf %15, %17 : vector<8x128xf32>
    %27 = math.tanh %26 : vector<8x128xf32>
    %28 = arith.mulf %25, %27 : vector<8x128xf32>
    %29 = arith.truncf %28 : vector<8x128xf32> to vector<8x128xbf16>
    %30 = vector.extract_strided_slice %6 {offsets = [0, 384], sizes = [8, 384], strides = [1, 1]} : vector<8x768xf32> to vector<8x384xf32>
    %31 = vector.extract_strided_slice %30 {offsets = [0, 0], sizes = [8, 128], strides = [1, 1]} : vector<8x384xf32> to vector<8x128xf32>
    %cst_11 = arith.constant 5.000000e-01 : f32
    %32 = vector.broadcast %cst_11 : f32 to vector<8x128xf32>
    %33 = arith.mulf %32, %31 : vector<8x128xf32>
    %34 = math.tanh %33 : vector<8x128xf32>
    %cst_12 = arith.constant 5.000000e-01 : f32
    %35 = vector.broadcast %cst_12 : f32 to vector<8x128xf32>
    %36 = arith.mulf %35, %34 : vector<8x128xf32>
    %cst_13 = arith.constant 5.000000e-01 : f32
    %37 = vector.broadcast %cst_13 : f32 to vector<8x128xf32>
    %38 = arith.addf %36, %37 : vector<8x128xf32>
    %39 = vector.extract_strided_slice %30 {offsets = [0, 128], sizes = [8, 128], strides = [1, 1]} : vector<8x384xf32> to vector<8x128xf32>
    %40 = math.tanh %39 : vector<8x128xf32>
    %41 = vector.extract_strided_slice %30 {offsets = [0, 256], sizes = [8, 128], strides = [1, 1]} : vector<8x384xf32> to vector<8x128xf32>
    %cst_14 = arith.constant 5.000000e-01 : f32
    %42 = vector.broadcast %cst_14 : f32 to vector<8x128xf32>
    %43 = arith.mulf %42, %41 : vector<8x128xf32>
    %44 = math.tanh %43 : vector<8x128xf32>
    %cst_15 = arith.constant 5.000000e-01 : f32
    %45 = vector.broadcast %cst_15 : f32 to vector<8x128xf32>
    %46 = arith.mulf %45, %44 : vector<8x128xf32>
    %cst_16 = arith.constant 5.000000e-01 : f32
    %47 = vector.broadcast %cst_16 : f32 to vector<8x128xf32>
    %48 = arith.addf %46, %47 : vector<8x128xf32>
    %49 = arith.mulf %38, %40 : vector<8x128xf32>
    %50 = math.tanh %49 : vector<8x128xf32>
    %51 = arith.mulf %48, %50 : vector<8x128xf32>
    %52 = arith.truncf %51 : vector<8x128xf32> to vector<8x128xbf16>
    %c0_17 = arith.constant 0 : index
    %c0_18 = arith.constant 0 : index
    %53 = vector.load %arg4[%c0_17, %c0_18] : memref<128x768xbf16, #tpu.memory_space<vmem>>, vector<128x768xbf16>
    %cst_19 = arith.constant dense<0.000000e+00> : vector<8x768xf32>
    %54 = tpu.matmul %29, %53, %cst_19 {dimension_numbers = #tpu.dot_dimension_numbers<[1], [0], [0], [1], [0, 0, 1, 1], [], []>} : vector<8x128xbf16>, vector<128x768xbf16>, vector<8x768xf32> -> vector<8x768xf32>
    %c0_20 = arith.constant 0 : index
    %c0_21 = arith.constant 0 : index
    %55 = vector.load %arg5[%c0_20, %c0_21] : memref<128x768xbf16, #tpu.memory_space<vmem>>, vector<128x768xbf16>
    %cst_22 = arith.constant dense<0.000000e+00> : vector<8x768xf32>
    %56 = tpu.matmul %52, %55, %cst_22 {dimension_numbers = #tpu.dot_dimension_numbers<[1], [0], [0], [1], [0, 0, 1, 1], [], []>} : vector<8x128xbf16>, vector<128x768xbf16>, vector<8x768xf32> -> vector<8x768xf32>
    %57 = arith.addf %54, %56 : vector<8x768xf32>
    %c0_23 = arith.constant 0 : index
    %c0_24 = arith.constant 0 : index
    %58 = vector.load %arg6[%c0_23, %c0_24] : memref<1x768xf32, #tpu.memory_space<vmem>>, vector<1x768xf32>
    %59 = vector.broadcast %58 : vector<1x768xf32> to vector<8x768xf32>
    %60 = arith.addf %57, %59 : vector<8x768xf32>
    %61 = vector.extract_strided_slice %60 {offsets = [0, 0], sizes = [8, 384], strides = [1, 1]} : vector<8x768xf32> to vector<8x384xf32>
    %62 = vector.extract_strided_slice %61 {offsets = [0, 0], sizes = [8, 128], strides = [1, 1]} : vector<8x384xf32> to vector<8x128xf32>
    %cst_25 = arith.constant 5.000000e-01 : f32
    %63 = vector.broadcast %cst_25 : f32 to vector<8x128xf32>
    %64 = arith.mulf %63, %62 : vector<8x128xf32>
    %65 = math.tanh %64 : vector<8x128xf32>
    %cst_26 = arith.constant 5.000000e-01 : f32
    %66 = vector.broadcast %cst_26 : f32 to vector<8x128xf32>
    %67 = arith.mulf %66, %65 : vector<8x128xf32>
    %cst_27 = arith.constant 5.000000e-01 : f32
    %68 = vector.broadcast %cst_27 : f32 to vector<8x128xf32>
    %69 = arith.addf %67, %68 : vector<8x128xf32>
    %70 = vector.extract_strided_slice %61 {offsets = [0, 128], sizes = [8, 128], strides = [1, 1]} : vector<8x384xf32> to vector<8x128xf32>
    %71 = math.tanh %70 : vector<8x128xf32>
    %72 = vector.extract_strided_slice %61 {offsets = [0, 256], sizes = [8, 128], strides = [1, 1]} : vector<8x384xf32> to vector<8x128xf32>
    %cst_28 = arith.constant 5.000000e-01 : f32
    %73 = vector.broadcast %cst_28 : f32 to vector<8x128xf32>
    %74 = arith.mulf %73, %72 : vector<8x128xf32>
    %75 = math.tanh %74 : vector<8x128xf32>
    %cst_29 = arith.constant 5.000000e-01 : f32
    %76 = vector.broadcast %cst_29 : f32 to vector<8x128xf32>
    %77 = arith.mulf %76, %75 : vector<8x128xf32>
    %cst_30 = arith.constant 5.000000e-01 : f32
    %78 = vector.broadcast %cst_30 : f32 to vector<8x128xf32>
    %79 = arith.addf %77, %78 : vector<8x128xf32>
    %80 = arith.mulf %69, %71 : vector<8x128xf32>
    %81 = math.tanh %80 : vector<8x128xf32>
    %82 = arith.mulf %79, %81 : vector<8x128xf32>
    %83 = arith.truncf %82 : vector<8x128xf32> to vector<8x128xbf16>
    %84 = vector.extract_strided_slice %60 {offsets = [0, 384], sizes = [8, 384], strides = [1, 1]} : vector<8x768xf32> to vector<8x384xf32>
    %85 = vector.extract_strided_slice %84 {offsets = [0, 0], sizes = [8, 128], strides = [1, 1]} : vector<8x384xf32> to vector<8x128xf32>
    %cst_31 = arith.constant 5.000000e-01 : f32
    %86 = vector.broadcast %cst_31 : f32 to vector<8x128xf32>
    %87 = arith.mulf %86, %85 : vector<8x128xf32>
    %88 = math.tanh %87 : vector<8x128xf32>
    %cst_32 = arith.constant 5.000000e-01 : f32
    %89 = vector.broadcast %cst_32 : f32 to vector<8x128xf32>
    %90 = arith.mulf %89, %88 : vector<8x128xf32>
    %cst_33 = arith.constant 5.000000e-01 : f32
    %91 = vector.broadcast %cst_33 : f32 to vector<8x128xf32>
    %92 = arith.addf %90, %91 : vector<8x128xf32>
    %93 = vector.extract_strided_slice %84 {offsets = [0, 128], sizes = [8, 128], strides = [1, 1]} : vector<8x384xf32> to vector<8x128xf32>
    %94 = math.tanh %93 : vector<8x128xf32>
    %95 = vector.extract_strided_slice %84 {offsets = [0, 256], sizes = [8, 128], strides = [1, 1]} : vector<8x384xf32> to vector<8x128xf32>
    %cst_34 = arith.constant 5.000000e-01 : f32
    %96 = vector.broadcast %cst_34 : f32 to vector<8x128xf32>
    %97 = arith.mulf %96, %95 : vector<8x128xf32>
    %98 = math.tanh %97 : vector<8x128xf32>
    %cst_35 = arith.constant 5.000000e-01 : f32
    %99 = vector.broadcast %cst_35 : f32 to vector<8x128xf32>
    %100 = arith.mulf %99, %98 : vector<8x128xf32>
    %cst_36 = arith.constant 5.000000e-01 : f32
    %101 = vector.broadcast %cst_36 : f32 to vector<8x128xf32>
    %102 = arith.addf %100, %101 : vector<8x128xf32>
    %103 = arith.mulf %92, %94 : vector<8x128xf32>
    %104 = math.tanh %103 : vector<8x128xf32>
    %105 = arith.mulf %102, %104 : vector<8x128xf32>
    %106 = arith.truncf %105 : vector<8x128xf32> to vector<8x128xbf16>
    %c0_37 = arith.constant 0 : index
    %c0_38 = arith.constant 0 : index
    %107 = vector.load %arg7[%c0_37, %c0_38] : memref<128x128xbf16, #tpu.memory_space<vmem>>, vector<128x128xbf16>
    %cst_39 = arith.constant dense<0.000000e+00> : vector<8x128xf32>
    %108 = tpu.matmul %83, %107, %cst_39 {dimension_numbers = #tpu.dot_dimension_numbers<[1], [0], [0], [1], [0, 0, 1, 1], [], []>} : vector<8x128xbf16>, vector<128x128xbf16>, vector<8x128xf32> -> vector<8x128xf32>
    %c0_40 = arith.constant 0 : index
    %c0_41 = arith.constant 0 : index
    %109 = vector.load %arg8[%c0_40, %c0_41] : memref<128x128xbf16, #tpu.memory_space<vmem>>, vector<128x128xbf16>
    %cst_42 = arith.constant dense<0.000000e+00> : vector<8x128xf32>
    %110 = tpu.matmul %106, %109, %cst_42 {dimension_numbers = #tpu.dot_dimension_numbers<[1], [0], [0], [1], [0, 0, 1, 1], [], []>} : vector<8x128xbf16>, vector<128x128xbf16>, vector<8x128xf32> -> vector<8x128xf32>
    %111 = arith.addf %108, %110 : vector<8x128xf32>
    %c0_43 = arith.constant 0 : index
    %c0_44 = arith.constant 0 : index
    %112 = vector.load %arg9[%c0_43, %c0_44] : memref<1x128xf32, #tpu.memory_space<vmem>>, vector<1x128xf32>
    %113 = vector.broadcast %112 : vector<1x128xf32> to vector<8x128xf32>
    %114 = arith.addf %111, %113 : vector<8x128xf32>
    %cst_45 = arith.constant 0.000000e+00 : f32
    %115 = vector.broadcast %cst_45 : f32 to vector<8x128xf32>
    %116 = arith.maximumf %114, %115 : vector<8x128xf32>
    %117 = arith.truncf %116 : vector<8x128xf32> to vector<8x128xbf16>
    %c0_46 = arith.constant 0 : index
    %c0_47 = arith.constant 0 : index
    %118 = vector.load %arg10[%c0_46, %c0_47] : memref<128x128xbf16, #tpu.memory_space<vmem>>, vector<128x128xbf16>
    %cst_48 = arith.constant dense<0.000000e+00> : vector<8x128xf32>
    %119 = tpu.matmul %117, %118, %cst_48 {dimension_numbers = #tpu.dot_dimension_numbers<[1], [0], [0], [1], [0, 0, 1, 1], [], []>} : vector<8x128xbf16>, vector<128x128xbf16>, vector<8x128xf32> -> vector<8x128xf32>
    %c0_49 = arith.constant 0 : index
    %c0_50 = arith.constant 0 : index
    %120 = vector.load %arg11[%c0_49, %c0_50] : memref<1x128xf32, #tpu.memory_space<vmem>>, vector<1x128xf32>
    %121 = vector.broadcast %120 : vector<1x128xf32> to vector<8x128xf32>
    %122 = arith.addf %119, %121 : vector<8x128xf32>
    %cst_51 = arith.constant 0.000000e+00 : f32
    %123 = vector.broadcast %cst_51 : f32 to vector<8x128xf32>
    %124 = arith.maximumf %122, %123 : vector<8x128xf32>
    %c0_52 = arith.constant 0 : index
    %c0_53 = arith.constant 0 : index
    %125 = vector.load %arg12[%c0_52, %c0_53] : memref<1x128xf32, #tpu.memory_space<vmem>>, vector<1x128xf32>
    %cst_54 = arith.constant dense<0.000000e+00> : vector<1x8xf32>
    %126 = tpu.matmul %125, %124, %cst_54 {dimension_numbers = #tpu.dot_dimension_numbers<[1], [1], [0], [0], [0, 0, 1, 0], [], []>} : vector<1x128xf32>, vector<8x128xf32>, vector<1x8xf32> -> vector<1x8xf32>
    %cst_55 = arith.constant 5.000000e-01 : f32
    %127 = vector.broadcast %cst_55 : f32 to vector<1x8xf32>
    %128 = arith.mulf %127, %126 : vector<1x8xf32>
    %129 = math.tanh %128 : vector<1x8xf32>
    %cst_56 = arith.constant 5.000000e-01 : f32
    %130 = vector.broadcast %cst_56 : f32 to vector<1x8xf32>
    %131 = arith.mulf %130, %129 : vector<1x8xf32>
    %cst_57 = arith.constant 5.000000e-01 : f32
    %132 = vector.broadcast %cst_57 : f32 to vector<1x8xf32>
    %133 = arith.addf %131, %132 : vector<1x8xf32>
    %c0_58 = arith.constant 0 : index
    %c0_59 = arith.constant 0 : index
    %c0_60 = arith.constant 0 : index
    %134 = vector.load %arg13[%c0_58, %c0_59, %c0_60] : memref<1x1x8xf32, #tpu.memory_space<vmem>>, vector<1x1x8xf32>
    %135 = vector.shape_cast %134 : vector<1x1x8xf32> to vector<1x8xf32>
    %136 = vector.shape_cast %133 : vector<1x8xf32> to vector<1x1x8xf32>
    tpu.vector_store %arg13[%c0_58, %c0_59, %c0_60], %136 {strides = array<i32>} : memref<1x1x8xf32, #tpu.memory_space<vmem>>, vector<1x1x8xf32>,
    return
  }
  func.func @transform_0(%arg0: i32) -> (i32, i32) {
    %c0_i32 = arith.constant 0 : i32
    %c0_i32_0 = arith.constant 0 : i32
    return %arg0, %c0_i32 : i32, i32
  }
  func.func @transform_1(%arg0: i32) -> (i32, i32) {
    %c0_i32 = arith.constant 0 : i32
    %c0_i32_0 = arith.constant 0 : i32
    %c0_i32_1 = arith.constant 0 : i32
    return %c0_i32, %c0_i32_0 : i32, i32
  }
  func.func @transform_2(%arg0: i32) -> (i32, i32) {
    %c0_i32 = arith.constant 0 : i32
    %c0_i32_0 = arith.constant 0 : i32
    %c0_i32_1 = arith.constant 0 : i32
    return %c0_i32, %c0_i32_0 : i32, i32
  }
  func.func @transform_3(%arg0: i32) -> (i32, i32) {
    %c0_i32 = arith.constant 0 : i32
    %c0_i32_0 = arith.constant 0 : i32
    %c0_i32_1 = arith.constant 0 : i32
    return %c0_i32, %c0_i32_0 : i32, i32
  }
  func.func @transform_4(%arg0: i32) -> (i32, i32) {
    %c0_i32 = arith.constant 0 : i32
    %c0_i32_0 = arith.constant 0 : i32
    %c0_i32_1 = arith.constant 0 : i32
    return %c0_i32, %c0_i32_0 : i32, i32
  }
  func.func @transform_5(%arg0: i32) -> (i32, i32) {
    %c0_i32 = arith.constant 0 : i32
    %c0_i32_0 = arith.constant 0 : i32
    %c0_i32_1 = arith.constant 0 : i32
    return %c0_i32, %c0_i32_0 : i32, i32
  }
  func.func @transform_6(%arg0: i32) -> (i32, i32) {
    %c0_i32 = arith.constant 0 : i32
    %c0_i32_0 = arith.constant 0 : i32
    %c0_i32_1 = arith.constant 0 : i32
    return %c0_i32, %c0_i32_0 : i32, i32
  }
  func.func @transform_7(%arg0: i32) -> (i32, i32) {
    %c0_i32 = arith.constant 0 : i32
    %c0_i32_0 = arith.constant 0 : i32
    %c0_i32_1 = arith.constant 0 : i32
    return %c0_i32, %c0_i32_0 : i32, i32
  }
  func.func @transform_8(%arg0: i32) -> (i32, i32) {
    %c0_i32 = arith.constant 0 : i32
    %c0_i32_0 = arith.constant 0 : i32
    %c0_i32_1 = arith.constant 0 : i32
    return %c0_i32, %c0_i32_0 : i32, i32
  }
  func.func @transform_9(%arg0: i32) -> (i32, i32) {
    %c0_i32 = arith.constant 0 : i32
    %c0_i32_0 = arith.constant 0 : i32
    %c0_i32_1 = arith.constant 0 : i32
    return %c0_i32, %c0_i32_0 : i32, i32
  }
  func.func @transform_10(%arg0: i32) -> (i32, i32) {
    %c0_i32 = arith.constant 0 : i32
    %c0_i32_0 = arith.constant 0 : i32
    %c0_i32_1 = arith.constant 0 : i32
    return %c0_i32, %c0_i32_0 : i32, i32
  }
  func.func @transform_11(%arg0: i32) -> (i32, i32) {
    %c0_i32 = arith.constant 0 : i32
    %c0_i32_0 = arith.constant 0 : i32
    %c0_i32_1 = arith.constant 0 : i32
    return %c0_i32, %c0_i32_0 : i32, i32
  }
  func.func @transform_12(%arg0: i32) -> (i32, i32, i32) {
    %c0_i32 = arith.constant 0 : i32
    %c0_i32_0 = arith.constant 0 : i32
    %c0_i32_1 = arith.constant 0 : i32
    return %arg0, %c0_i32, %c0_i32_0 : i32, i32, i32
  }
}

</mosaic_0001>

<llo_original>
// kernel: lstm_binary_classifier.1
$region0: #{lstm_binary_classifier.1}
  #allocation0 [shape = 'u32[]', space=smem, size = 0x4, offset = 0x4, fixed_abs, tag = 'smem constant byte address 0x4 - core index']
  #allocation1 [shape = 'u32[144,128]{1,0:T(1,128)}', space=vmem, size = 0x12000, scoped, tag = 'internal scratch']
  %s0 = inlined_call_operand.hbm [shape: f32[8,32], index: 0, kind: input, shape index: {}]
  %s1 = inlined_call_operand.hbm [shape: bf16[32,768], index: 1, kind: input, shape index: {}]
  %s2 = inlined_call_operand.vmem [shape: f32[1,768], index: 2, kind: input, shape index: {}]
  %s3 = inlined_call_operand.hbm [shape: bf16[128,768], index: 3, kind: input, shape index: {}]
  %s4 = inlined_call_operand.hbm [shape: bf16[128,768], index: 4, kind: input, shape index: {}]
  %s5 = inlined_call_operand.vmem [shape: f32[1,768], index: 5, kind: input, shape index: {}]
  %s6 = inlined_call_operand.hbm [shape: bf16[128,128], index: 6, kind: input, shape index: {}]
  %s7 = inlined_call_operand.hbm [shape: bf16[128,128], index: 7, kind: input, shape index: {}]
  %s8 = inlined_call_operand.vmem [shape: f32[1,128], index: 8, kind: input, shape index: {}]
  %s9 = inlined_call_operand.hbm [shape: bf16[128,128], index: 9, kind: input, shape index: {}]
  %s10 = inlined_call_operand.vmem [shape: f32[1,128], index: 10, kind: input, shape index: {}]
  %s11 = inlined_call_operand.vmem [shape: f32[1,128], index: 11, kind: input, shape index: {}]
  %s12 = inlined_call_operand.hbm [shape: f32[1,1,8], index: 12, kind: output, shape index: {}]
  %s13 = sld [smem:[#allocation0]]
  $region86: #{lstm_binary_classifier.1} parent=0
    _
  %s15 = ssub.s32 1, %s13
  %s16 = scalar_select 0, %s15, %s13
  $region1: #{lstm_binary_classifier.1} parent=0
    #allocation2 [shape = 'u8[4096]{0}', space=vmem, size = 0x1000, scoped, tag = 'input window, operand 0, single buffered']
    #allocation3 [shape = 's32[1]{0}', space=sflag, size = 0x4, scoped, tag = 'scoped memory for lstm_binary_classifier.1']
    #allocation4 [shape = 's32[1]{0}', space=sflag, size = 0x4, scoped, tag = 'scoped memory for lstm_binary_classifier.1']
    #allocation5 [shape = 'u8[49152]{0}', space=vmem, size = 0xc000, scoped, tag = 'input window, operand 1, single buffered']
    #allocation6 [shape = 's32[1]{0}', space=sflag, size = 0x4, scoped, tag = 'scoped memory for lstm_binary_classifier.1']
    #allocation7 [shape = 'u8[196608]{0}', space=vmem, size = 0x30000, scoped, tag = 'input window, operand 3, single buffered']
    #allocation8 [shape = 'u8[196608]{0}', space=vmem, size = 0x30000, scoped, tag = 'input window, operand 4, single buffered']
    #allocation9 [shape = 's32[1]{0}', space=sflag, size = 0x4, scoped, tag = 'scoped memory for lstm_binary_classifier.1']
    #allocation10 [shape = 'u8[32768]{0}', space=vmem, size = 0x8000, scoped, tag = 'input window, operand 6, single buffered']
    #allocation11 [shape = 'u8[32768]{0}', space=vmem, size = 0x8000, scoped, tag = 'input window, operand 7, single buffered']
    #allocation12 [shape = 's32[1]{0}', space=sflag, size = 0x4, scoped, tag = 'scoped memory for lstm_binary_classifier.1']
    #allocation13 [shape = 'u8[32768]{0}', space=vmem, size = 0x8000, scoped, tag = 'input window, operand 9, single buffered']
    #allocation14 [shape = 'u8[512]{0}', space=vmem, size = 0x400, scoped, tag = 'output window, operand 0, single buffered']
    %17 = vsyncpa [#allocation3], 0
    %18 = vsyncpa [#allocation6], 0
    %19 = vsyncpa [#allocation9], 0
    %20 = vsyncpa [#allocation12], 0
    %21 = vsyncpa [#allocation4], 0
    // Predicated region
    $region2: #{lstm_binary_classifier.1} parent=1 // pred_check
      _
    $region3: #{lstm_binary_classifier.1} parent=1 // pred_check_branch
      %23 = sbr.rel (0) target = $region5
    $region4: #{lstm_binary_classifier.1} parent=1 // pred_region
      %s25 = ssub.s32 128, 128
      %26 = vsyncadd [#allocation3], %s25
      %s28 = sshll.u32 [#allocation2], 4
      %s29 = int_to_ptr.vmem [resolvable:$true] %s28
      %31 = dma.hbm_to_vmem [thread:$0]  %s0, 128, %s29, [#allocation3]
    $region5: #{lstm_binary_classifier.1} parent=1 // pred_fallthru
      _
    // Predicated region
    $region6: #{lstm_binary_classifier.1} parent=1 // pred_check
      _
    $region7: #{lstm_binary_classifier.1} parent=1 // pred_check_branch
      %33 = sbr.rel (0) target = $region9
    $region8: #{lstm_binary_classifier.1} parent=1 // pred_region
      %s35 = ssub.s32 1536, 1536
      %36 = vsyncadd [#allocation6], %s35
      %s37 = sshll.u32 [#allocation5], 4
      %s38 = int_to_ptr.vmem [resolvable:$true] %s37
      %43 = dma.hbm_to_vmem [thread:$0]  %s1, 1536, %s38, [#allocation6], 384, 384, 24
    $region9: #{lstm_binary_classifier.1} parent=1 // pred_fallthru
      _
    // Predicated region
    $region10: #{lstm_binary_classifier.1} parent=1 // pred_check
      _
    $region11: #{lstm_binary_classifier.1} parent=1 // pred_check_branch
      %45 = sbr.rel (0) target = $region13
    $region12: #{lstm_binary_classifier.1} parent=1 // pred_region
      _
    $region13: #{lstm_binary_classifier.1} parent=1 // pred_fallthru
      _
    // Predicated region
    $region14: #{lstm_binary_classifier.1} parent=1 // pred_check
      _
    $region15: #{lstm_binary_classifier.1} parent=1 // pred_check_branch
      %47 = sbr.rel (0) target = $region17
    $region16: #{lstm_binary_classifier.1} parent=1 // pred_region
      %s49 = ssub.s32 6144, 6144
      %50 = vsyncadd [#allocation6], %s49
      %s51 = sshll.u32 [#allocation7], 4
      %s52 = int_to_ptr.vmem [resolvable:$true] %s51
      %57 = dma.hbm_to_vmem [thread:$0]  %s3, 6144, %s52, [#allocation6], 384, 384, 24
    $region17: #{lstm_binary_classifier.1} parent=1 // pred_fallthru
      _
    // Predicated region
    $region18: #{lstm_binary_classifier.1} parent=1 // pred_check
      _
    $region19: #{lstm_binary_classifier.1} parent=1 // pred_check_branch
      %59 = sbr.rel (0) target = $region21
    $region20: #{lstm_binary_classifier.1} parent=1 // pred_region
      %s61 = ssub.s32 6144, 6144
      %62 = vsyncadd [#allocation9], %s61
      %s63 = sshll.u32 [#allocation8], 4
      %s64 = int_to_ptr.vmem [resolvable:$true] %s63
      %69 = dma.hbm_to_vmem [thread:$0]  %s4, 6144, %s64, [#allocation9], 384, 384, 24
    $region21: #{lstm_binary_classifier.1} parent=1 // pred_fallthru
      _
    // Predicated region
    $region22: #{lstm_binary_classifier.1} parent=1 // pred_check
      _
    $region23: #{lstm_binary_classifier.1} parent=1 // pred_check_branch
      %71 = sbr.rel (0) target = $region25
    $region24: #{lstm_binary_classifier.1} parent=1 // pred_region
      _
    $region25: #{lstm_binary_classifier.1} parent=1 // pred_fallthru
      _
    // Predicated region
    $region26: #{lstm_binary_classifier.1} parent=1 // pred_check
      _
    $region27: #{lstm_binary_classifier.1} parent=1 // pred_check_branch
      %73 = sbr.rel (0) target = $region29
    $region28: #{lstm_binary_classifier.1} parent=1 // pred_region
      %s75 = ssub.s32 1024, 1024
      %76 = vsyncadd [#allocation9], %s75
      %s77 = sshll.u32 [#allocation10], 4
      %s78 = int_to_ptr.vmem [resolvable:$true] %s77
      %83 = dma.hbm_to_vmem [thread:$0]  %s6, 1024, %s78, [#allocation9], 64, 64, 4
    $region29: #{lstm_binary_classifier.1} parent=1 // pred_fallthru
      _
    // Predicated region
    $region30: #{lstm_binary_classifier.1} parent=1 // pred_check
      _
    $region31: #{lstm_binary_classifier.1} parent=1 // pred_check_branch
      %85 = sbr.rel (0) target = $region33
    $region32: #{lstm_binary_classifier.1} parent=1 // pred_region
      %s87 = ssub.s32 1024, 1024
      %88 = vsyncadd [#allocation12], %s87
      %s89 = sshll.u32 [#allocation11], 4
      %s90 = int_to_ptr.vmem [resolvable:$true] %s89
      %95 = dma.hbm_to_vmem [thread:$0]  %s7, 1024, %s90, [#allocation12], 64, 64, 4
    $region33: #{lstm_binary_classifier.1} parent=1 // pred_fallthru
      _
    // Predicated region
    $region34: #{lstm_binary_classifier.1} parent=1 // pred_check
      _
    $region35: #{lstm_binary_classifier.1} parent=1 // pred_check_branch
      %97 = sbr.rel (0) target = $region37
    $region36: #{lstm_binary_classifier.1} parent=1 // pred_region
      _
    $region37: #{lstm_binary_classifier.1} parent=1 // pred_fallthru
      _
    // Predicated region
    $region38: #{lstm_binary_classifier.1} parent=1 // pred_check
      _
    $region39: #{lstm_binary_classifier.1} parent=1 // pred_check_branch
      %99 = sbr.rel (0) target = $region41
    $region40: #{lstm_binary_classifier.1} parent=1 // pred_region
      %s101 = ssub.s32 1024, 1024
      %102 = vsyncadd [#allocation12], %s101
      %s103 = sshll.u32 [#allocation13], 4
      %s104 = int_to_ptr.vmem [resolvable:$true] %s103
      %109 = dma.hbm_to_vmem [thread:$0]  %s9, 1024, %s104, [#allocation12], 64, 64, 4
    $region41: #{lstm_binary_classifier.1} parent=1 // pred_fallthru
      _
    // Predicated region
    $region42: #{lstm_binary_classifier.1} parent=1 // pred_check
      _
    $region43: #{lstm_binary_classifier.1} parent=1 // pred_check_branch
      %111 = sbr.rel (0) target = $region45
    $region44: #{lstm_binary_classifier.1} parent=1 // pred_region
      _
    $region45: #{lstm_binary_classifier.1} parent=1 // pred_fallthru
      _
    // Predicated region
    $region46: #{lstm_binary_classifier.1} parent=1 // pred_check
      _
    $region47: #{lstm_binary_classifier.1} parent=1 // pred_check_branch
      %113 = sbr.rel (0) target = $region49
    $region48: #{lstm_binary_classifier.1} parent=1 // pred_region
      _
    $region49: #{lstm_binary_classifier.1} parent=1 // pred_fallthru
      _
    // Predicated region
    $region50: #{lstm_binary_classifier.1} parent=1 // pred_check
      _
    $region51: #{lstm_binary_classifier.1} parent=1 // pred_check_branch
      %115 = sbr.rel (0) target = $region53
    $region52: #{lstm_binary_classifier.1} parent=1 // pred_region
      %116 = dma.done [#allocation3], 128
    $region53: #{lstm_binary_classifier.1} parent=1 // pred_fallthru
      _
    // Predicated region
    $region54: #{lstm_binary_classifier.1} parent=1 // pred_check
      _
    $region55: #{lstm_binary_classifier.1} parent=1 // pred_check_branch
      %118 = sbr.rel (0) target = $region57
    $region56: #{lstm_binary_classifier.1} parent=1 // pred_region
      %119 = dma.done [#allocation6], 1536
    $region57: #{lstm_binary_classifier.1} parent=1 // pred_fallthru
      _
    // Predicated region
    $region58: #{lstm_binary_classifier.1} parent=1 // pred_check
      _
    $region59: #{lstm_binary_classifier.1} parent=1 // pred_check_branch
      %121 = sbr.rel (0) target = $region61
    $region60: #{lstm_binary_classifier.1} parent=1 // pred_region
      %122 = dma.done [#allocation6], 6144
    $region61: #{lstm_binary_classifier.1} parent=1 // pred_fallthru
      _
    // Predicated region
    $region62: #{lstm_binary_classifier.1} parent=1 // pred_check
      _
    $region63: #{lstm_binary_classifier.1} parent=1 // pred_check_branch
      %124 = sbr.rel (0) target = $region65
    $region64: #{lstm_binary_classifier.1} parent=1 // pred_region
      %125 = dma.done [#allocation9], 6144
    $region65: #{lstm_binary_classifier.1} parent=1 // pred_fallthru
      _
    // Predicated region
    $region66: #{lstm_binary_classifier.1} parent=1 // pred_check
      _
    $region67: #{lstm_binary_classifier.1} parent=1 // pred_check_branch
      %127 = sbr.rel (0) target = $region69
    $region68: #{lstm_binary_classifier.1} parent=1 // pred_region
      %128 = dma.done [#allocation9], 1024
    $region69: #{lstm_binary_classifier.1} parent=1 // pred_fallthru
      _
    // Predicated region
    $region70: #{lstm_binary_classifier.1} parent=1 // pred_check
      _
    $region71: #{lstm_binary_classifier.1} parent=1 // pred_check_branch
      %130 = sbr.rel (0) target = $region73
    $region72: #{lstm_binary_classifier.1} parent=1 // pred_region
      %131 = dma.done [#allocation12], 1024
    $region73: #{lstm_binary_classifier.1} parent=1 // pred_fallthru
      _
    // Predicated region
    $region74: #{lstm_binary_classifier.1} parent=1 // pred_check
      _
    $region75: #{lstm_binary_classifier.1} parent=1 // pred_check_branch
      %133 = sbr.rel (0) target = $region77
    $region76: #{lstm_binary_classifier.1} parent=1 // pred_region
      %134 = dma.done [#allocation12], 1024
    $region77: #{lstm_binary_classifier.1} parent=1 // pred_fallthru
      _
    %v136 = vld [vmem:[#allocation2] sm:$0xff]
    %v137 = vpack.c.bf16 %v136, %v136
    %v138 = vld [vmem:[#allocation5] sm:$0xff]
    %v139 = vld [vmem:[#allocation5 + $0x8] sm:$0xff]
    %v140 = vld [vmem:[#allocation5 + $0x10] sm:$0xff]
    %v141 = vld [vmem:[#allocation5 + $0x18] sm:$0xff]
    %v142 = vld [vmem:[#allocation5 + $0x20] sm:$0xff]
    %v143 = vld [vmem:[#allocation5 + $0x28] sm:$0xff]
    %v144 = vld [vmem:[#allocation5 + $0x30] sm:$0xff]
    %v145 = vld [vmem:[#allocation5 + $0x38] sm:$0xff]
    %v146 = vld [vmem:[#allocation5 + $0x40] sm:$0xff]
    %v147 = vld [vmem:[#allocation5 + $0x48] sm:$0xff]
    %v148 = vld [vmem:[#allocation5 + $0x50] sm:$0xff]
    %v149 = vld [vmem:[#allocation5 + $0x58] sm:$0xff]
    %v150 = vld [vmem:[%s2] sm:$0x3f]
    %v152 = vlaneseq
    %v153 = vshrl.u32 %v152, 7
    %v154 = vsub.s32 0, %v153
    %v155 = vrot.slane %v150, %v154
    %v156 = vlaneseq
    %v157 = vshrl.u32 %v156, 7
    %v158 = vsub.s32 1, %v157
    %v159 = vrot.slane %v150, %v158
    %v160 = vlaneseq
    %v161 = vshrl.u32 %v160, 7
    %v162 = vsub.s32 2, %v161
    %v163 = vrot.slane %v150, %v162
    %v164 = vlaneseq
    %v165 = vshrl.u32 %v164, 7
    %v166 = vsub.s32 3, %v165
    %v167 = vrot.slane %v150, %v166
    %v168 = vlaneseq
    %v169 = vshrl.u32 %v168, 7
    %v170 = vsub.s32 4, %v169
    %v171 = vrot.slane %v150, %v170
    %v172 = vlaneseq
    %v173 = vshrl.u32 %v172, 7
    %v174 = vsub.s32 5, %v173
    %v175 = vrot.slane %v150, %v174
    %v194 = vunpack.c.l.b16 %v138
    %v195 = vunpack.c.h.b16 %v138
    %v196 = vunpack.c.l.b16 %v139
    %v197 = vunpack.c.h.b16 %v139
    %v198 = vunpack.c.l.b16 %v140
    %v199 = vunpack.c.h.b16 %v140
    %v200 = vunpack.c.l.b16 %v141
    %v201 = vunpack.c.h.b16 %v141
    %v202 = vunpack.c.l.b16 %v142
    %v203 = vunpack.c.h.b16 %v142
    %v204 = vunpack.c.l.b16 %v143
    %v205 = vunpack.c.h.b16 %v143
    %v206 = vunpack.c.l.b16 %v144
    %v207 = vunpack.c.h.b16 %v144
    %v208 = vunpack.c.l.b16 %v145
    %v209 = vunpack.c.h.b16 %v145
    %v210 = vunpack.c.l.b16 %v146
    %v211 = vunpack.c.h.b16 %v146
    %v212 = vunpack.c.l.b16 %v147
    %v213 = vunpack.c.h.b16 %v147
    %v214 = vunpack.c.l.b16 %v148
    %v215 = vunpack.c.h.b16 %v148
    %v216 = vunpack.c.l.b16 %v149
    %v217 = vunpack.c.h.b16 %v149
    %v218 = vpack.c.b16 %v200, %v194
    %v219 = vpack.c.b16 %v201, %v195
    %v220 = vpack.c.b16 %v202, %v196
    %v221 = vpack.c.b16 %v203, %v197
    %v222 = vpack.c.b16 %v204, %v198
    %v223 = vpack.c.b16 %v205, %v199
    %v224 = vpack.c.b16 %v212, %v206
    %v225 = vpack.c.b16 %v213, %v207
    %v226 = vpack.c.b16 %v214, %v208
    %v227 = vpack.c.b16 %v215, %v209
    %v228 = vpack.c.b16 %v216, %v210
    %v229 = vpack.c.b16 %v217, %v211
    %vm242 = vcmask 261120
    %v244 = vsel %vm242, %v137, 0
    %246 = vmatprep.subr.bf16.mxu0 %v219
    %247 = vmatpush1.bf16.msra.mxu0 %v218
    %248 = vmatprep.subr.bf16.mxu0 %v225
    %249 = vmatpush1.bf16.msra.mxu0 %v224
    %250 = vmatprep.subr.bf16.mxu0 0
    %251 = vmatpush1.bf16.msra.mxu0 0
    %252 = vmatprep.subr.bf16.mxu0 0
    %253 = vmatpush1.bf16.msra.mxu0 0
    %254 = vmatprep.subr.bf16.mxu0 0
    %255 = vmatpush1.bf16.msra.mxu0 0
    %256 = vmatprep.subr.bf16.mxu0 0
    %257 = vmatpush1.bf16.msra.mxu0 0
    %258 = vmatprep.subr.bf16.mxu0 0
    %259 = vmatpush1.bf16.msra.mxu0 0
    %260 = vmatprep.subr.bf16.mxu0 0
    %261 = vmatpush1.bf16.msra.mxu0 0
    %262 = vmatprep.subr.bf16.mxu0 0
    %263 = vmatpush1.bf16.msra.mxu0 0
    %264 = vmatprep.subr.bf16.mxu0 0
    %265 = vmatpush1.bf16.msra.mxu0 0
    %266 = vmatprep.subr.bf16.mxu0 0
    %267 = vmatpush1.bf16.msra.mxu0 0
    %268 = vmatprep.subr.bf16.mxu0 0
    %269 = vmatpush1.bf16.msra.mxu0 0
    %270 = vmatprep.subr.bf16.mxu0 0
    %271 = vmatpush1.bf16.msra.mxu0 0
    %272 = vmatprep.subr.bf16.mxu0 0
    %273 = vmatpush1.bf16.msra.mxu0 0
    %274 = vmatprep.subr.bf16.mxu0 0
    %275 = vmatpush1.bf16.msra.mxu0 0
    %276 = vmatprep.subr.bf16.mxu0 0
    %277 = vmatpush1.bf16.msra.mxu0 0
    %278 = vmatprep.mubr.bf16.mxu0 0
    %279 = vmatmul.mubr.bf16.gmra.mrb[0].mxu0 %v244
    %v280 = vpop.f32.mrb[0].mxu0
    %v281 = vadd.f32 %v155, %v280
    %v282 = vpop.f32.mrb[0].mxu0
    %v283 = vadd.f32 %v159, %v282
    %v284 = vpop.f32.mrb[0].mxu0
    %v285 = vpop.f32.mrb[0].mxu0
    %286 = vdwg.mxu0
    %287 = vmatprep.subr.bf16.mxu0 %v221
    %288 = vmatpush1.bf16.msra.mxu0 %v220
    %289 = vmatprep.subr.bf16.mxu0 %v227
    %290 = vmatpush1.bf16.msra.mxu0 %v226
    %291 = vmatprep.subr.bf16.mxu0 0
    %292 = vmatpush1.bf16.msra.mxu0 0
    %293 = vmatprep.subr.bf16.mxu0 0
    %294 = vmatpush1.bf16.msra.mxu0 0
    %295 = vmatprep.subr.bf16.mxu0 0
    %296 = vmatpush1.bf16.msra.mxu0 0
    %297 = vmatprep.subr.bf16.mxu0 0
    %298 = vmatpush1.bf16.msra.mxu0 0
    %299 = vmatprep.subr.bf16.mxu0 0
    %300 = vmatpush1.bf16.msra.mxu0 0
    %301 = vmatprep.subr.bf16.mxu0 0
    %302 = vmatpush1.bf16.msra.mxu0 0
    %303 = vmatprep.subr.bf16.mxu0 0
    %304 = vmatpush1.bf16.msra.mxu0 0
    %305 = vmatprep.subr.bf16.mxu0 0
    %306 = vmatpush1.bf16.msra.mxu0 0
    %307 = vmatprep.subr.bf16.mxu0 0
    %308 = vmatpush1.bf16.msra.mxu0 0
    %309 = vmatprep.subr.bf16.mxu0 0
    %310 = vmatpush1.bf16.msra.mxu0 0
    %311 = vmatprep.subr.bf16.mxu0 0
    %312 = vmatpush1.bf16.msra.mxu0 0
    %313 = vmatprep.subr.bf16.mxu0 0
    %314 = vmatpush1.bf16.msra.mxu0 0
    %315 = vmatprep.subr.bf16.mxu0 0
    %316 = vmatpush1.bf16.msra.mxu0 0
    %317 = vmatprep.subr.bf16.mxu0 0
    %318 = vmatpush1.bf16.msra.mxu0 0
    %319 = vmatprep.mubr.bf16.mxu0 0
    %320 = vmatmul.mubr.bf16.gmra.mrb[0].mxu0 %v244
    %v321 = vpop.f32.mrb[0].mxu0
    %v322 = vadd.f32 %v163, %v321
    %v323 = vpop.f32.mrb[0].mxu0
    %v324 = vadd.f32 %v167, %v323
    %v325 = vpop.f32.mrb[0].mxu0
    %v326 = vpop.f32.mrb[0].mxu0
    %327 = vdwg.mxu0
    %328 = vmatprep.subr.bf16.mxu0 %v223
    %329 = vmatpush1.bf16.msra.mxu0 %v222
    %330 = vmatprep.subr.bf16.mxu0 %v229
    %331 = vmatpush1.bf16.msra.mxu0 %v228
    %332 = vmatprep.subr.bf16.mxu0 0
    %333 = vmatpush1.bf16.msra.mxu0 0
    %334 = vmatprep.subr.bf16.mxu0 0
    %335 = vmatpush1.bf16.msra.mxu0 0
    %336 = vmatprep.subr.bf16.mxu0 0
    %337 = vmatpush1.bf16.msra.mxu0 0
    %338 = vmatprep.subr.bf16.mxu0 0
    %339 = vmatpush1.bf16.msra.mxu0 0
    %340 = vmatprep.subr.bf16.mxu0 0
    %341 = vmatpush1.bf16.msra.mxu0 0
    %342 = vmatprep.subr.bf16.mxu0 0
    %343 = vmatpush1.bf16.msra.mxu0 0
    %344 = vmatprep.subr.bf16.mxu0 0
    %345 = vmatpush1.bf16.msra.mxu0 0
    %346 = vmatprep.subr.bf16.mxu0 0
    %347 = vmatpush1.bf16.msra.mxu0 0
    %348 = vmatprep.subr.bf16.mxu0 0
    %349 = vmatpush1.bf16.msra.mxu0 0
    %350 = vmatprep.subr.bf16.mxu0 0
    %351 = vmatpush1.bf16.msra.mxu0 0
    %352 = vmatprep.subr.bf16.mxu0 0
    %353 = vmatpush1.bf16.msra.mxu0 0
    %354 = vmatprep.subr.bf16.mxu0 0
    %355 = vmatpush1.bf16.msra.mxu0 0
    %356 = vmatprep.subr.bf16.mxu0 0
    %357 = vmatpush1.bf16.msra.mxu0 0
    %358 = vmatprep.subr.bf16.mxu0 0
    %359 = vmatpush1.bf16.msra.mxu0 0
    %360 = vmatprep.mubr.bf16.mxu0 0
    %361 = vmatmul.mubr.bf16.gmra.mrb[0].mxu0 %v244
    %v362 = vpop.f32.mrb[0].mxu0
    %v363 = vadd.f32 %v171, %v362
    %v364 = vpop.f32.mrb[0].mxu0
    %v365 = vadd.f32 %v175, %v364
    %v366 = vpop.f32.mrb[0].mxu0
    %v367 = vpop.f32.mrb[0].mxu0
    %368 = vdwg.mxu0
    %v369 = vmul.f32 %v281, 0.5
    %v370 = vtanh.pop %v369
    %v371 = vmul.f32 %v370, 0.5
    %v372 = vadd.f32 %v371, 0.5
    %v373 = vtanh.pop %v283
    %v374 = vmul.f32 %v322, 0.5
    %v375 = vtanh.pop %v374
    %v376 = vmul.f32 %v375, 0.5
    %v377 = vadd.f32 %v376, 0.5
    %v378 = vmul.f32 %v372, %v373
    %v379 = vtanh.pop %v378
    %v380 = vmul.f32 %v377, %v379
    %v381 = vpack.c.bf16 %v380, %v380
    %v382 = vmul.f32 %v324, 0.5
    %v383 = vtanh.pop %v382
    %v384 = vmul.f32 %v383, 0.5
    %v385 = vadd.f32 %v384, 0.5
    %v386 = vtanh.pop %v363
    %v387 = vmul.f32 %v365, 0.5
    %v388 = vtanh.pop %v387
    %v389 = vmul.f32 %v388, 0.5
    %v390 = vadd.f32 %v389, 0.5
    %v391 = vmul.f32 %v385, %v386
    %v392 = vtanh.pop %v391
    %v393 = vmul.f32 %v390, %v392
    %v394 = vpack.c.bf16 %v393, %v393
    %v395 = vld [vmem:[#allocation7] sm:$0xff]
    %v396 = vld [vmem:[#allocation7 + $0x8] sm:$0xff]
    %v397 = vld [vmem:[#allocation7 + $0x10] sm:$0xff]
    %v398 = vld [vmem:[#allocation7 + $0x18] sm:$0xff]
    %v399 = vld [vmem:[#allocation7 + $0x20] sm:$0xff]
    %v400 = vld [vmem:[#allocation7 + $0x28] sm:$0xff]
    %v401 = vld [vmem:[#allocation7 + $0x30] sm:$0xff]
    %v402 = vld [vmem:[#allocation7 + $0x38] sm:$0xff]
    %v403 = vld [vmem:[#allocation7 + $0x40] sm:$0xff]
    %v404 = vld [vmem:[#allocation7 + $0x48] sm:$0xff]
    %v405 = vld [vmem:[#allocation7 + $0x50] sm:$0xff]
    %v406 = vld [vmem:[#allocation7 + $0x58] sm:$0xff]
    %v407 = vld [vmem:[#allocation7 + $0x60] sm:$0xff]
    %v408 = vld [vmem:[#allocation7 + $0x68] sm:$0xff]
    %v409 = vld [vmem:[#allocation7 + $0x70] sm:$0xff]
    %v410 = vld [vmem:[#allocation7 + $0x78] sm:$0xff]
    %v411 = vld [vmem:[#allocation7 + $0x80] sm:$0xff]
    %v412 = vld [vmem:[#allocation7 + $0x88] sm:$0xff]
    %v413 = vld [vmem:[#allocation7 + $0x90] sm:$0xff]
    %v414 = vld [vmem:[#allocation7 + $0x98] sm:$0xff]
    %v415 = vld [vmem:[#allocation7 + $0xa0] sm:$0xff]
    %v416 = vld [vmem:[#allocation7 + $0xa8] sm:$0xff]
    %v417 = vld [vmem:[#allocation7 + $0xb0] sm:$0xff]
    %v418 = vld [vmem:[#allocation7 + $0xb8] sm:$0xff]
    %v419 = vld [vmem:[#allocation7 + $0xc0] sm:$0xff]
    %v420 = vld [vmem:[#allocation7 + $0xc8] sm:$0xff]
    %v421 = vld [vmem:[#allocation7 + $0xd0] sm:$0xff]
    %v422 = vld [vmem:[#allocation7 + $0xd8] sm:$0xff]
    %v423 = vld [vmem:[#allocation7 + $0xe0] sm:$0xff]
    %v424 = vld [vmem:[#allocation7 + $0xe8] sm:$0xff]
    %v425 = vld [vmem:[#allocation7 + $0xf0] sm:$0xff]
    %v426 = vld [vmem:[#allocation7 + $0xf8] sm:$0xff]
    %v427 = vld [vmem:[#allocation7 + $0x100] sm:$0xff]
    %v428 = vld [vmem:[#allocation7 + $0x108] sm:$0xff]
    %v429 = vld [vmem:[#allocation7 + $0x110] sm:$0xff]
    %v430 = vld [vmem:[#allocation7 + $0x118] sm:$0xff]
    %v431 = vld [vmem:[#allocation7 + $0x120] sm:$0xff]
    %v432 = vld [vmem:[#allocation7 + $0x128] sm:$0xff]
    %v433 = vld [vmem:[#allocation7 + $0x130] sm:$0xff]
    %v434 = vld [vmem:[#allocation7 + $0x138] sm:$0xff]
    %v435 = vld [vmem:[#allocation7 + $0x140] sm:$0xff]
    %v436 = vld [vmem:[#allocation7 + $0x148] sm:$0xff]
    %v437 = vld [vmem:[#allocation7 + $0x150] sm:$0xff]
    %v438 = vld [vmem:[#allocation7 + $0x158] sm:$0xff]
    %v439 = vld [vmem:[#allocation7 + $0x160] sm:$0xff]
    %v440 = vld [vmem:[#allocation7 + $0x168] sm:$0xff]
    %v441 = vld [vmem:[#allocation7 + $0x170] sm:$0xff]
    %v442 = vld [vmem:[#allocation7 + $0x178] sm:$0xff]
    %v443 = vld [vmem:[#allocation8] sm:$0xff]
    %v444 = vld [vmem:[#allocation8 + $0x8] sm:$0xff]
    %v445 = vld [vmem:[#allocation8 + $0x10] sm:$0xff]
    %v446 = vld [vmem:[#allocation8 + $0x18] sm:$0xff]
    %v447 = vld [vmem:[#allocation8 + $0x20] sm:$0xff]
    %v448 = vld [vmem:[#allocation8 + $0x28] sm:$0xff]
    %v449 = vld [vmem:[#allocation8 + $0x30] sm:$0xff]
    %v450 = vld [vmem:[#allocation8 + $0x38] sm:$0xff]
    %v451 = vld [vmem:[#allocation8 + $0x40] sm:$0xff]
    %v452 = vld [vmem:[#allocation8 + $0x48] sm:$0xff]
    %v453 = vld [vmem:[#allocation8 + $0x50] sm:$0xff]
    %v454 = vld [vmem:[#allocation8 + $0x58] sm:$0xff]
    %v455 = vld [vmem:[#allocation8 + $0x60] sm:$0xff]
    %v456 = vld [vmem:[#allocation8 + $0x68] sm:$0xff]
    %v457 = vld [vmem:[#allocation8 + $0x70] sm:$0xff]
    %v458 = vld [vmem:[#allocation8 + $0x78] sm:$0xff]
    %v459 = vld [vmem:[#allocation8 + $0x80] sm:$0xff]
    %v460 = vld [vmem:[#allocation8 + $0x88] sm:$0xff]
    %v461 = vld [vmem:[#allocation8 + $0x90] sm:$0xff]
    %v462 = vld [vmem:[#allocation8 + $0x98] sm:$0xff]
    %v463 = vld [vmem:[#allocation8 + $0xa0] sm:$0xff]
    %v464 = vld [vmem:[#allocation8 + $0xa8] sm:$0xff]
    %v465 = vld [vmem:[#allocation8 + $0xb0] sm:$0xff]
    %v466 = vld [vmem:[#allocation8 + $0xb8] sm:$0xff]
    %v467 = vld [vmem:[#allocation8 + $0xc0] sm:$0xff]
    %v468 = vld [vmem:[#allocation8 + $0xc8] sm:$0xff]
    %v469 = vld [vmem:[#allocation8 + $0xd0] sm:$0xff]
    %v470 = vld [vmem:[#allocation8 + $0xd8] sm:$0xff]
    %v471 = vld [vmem:[#allocation8 + $0xe0] sm:$0xff]
    %v472 = vld [vmem:[#allocation8 + $0xe8] sm:$0xff]
    %v473 = vld [vmem:[#allocation8 + $0xf0] sm:$0xff]
    %v474 = vld [vmem:[#allocation8 + $0xf8] sm:$0xff]
    %v475 = vld [vmem:[#allocation8 + $0x100] sm:$0xff]
    %v476 = vld [vmem:[#allocation8 + $0x108] sm:$0xff]
    %v477 = vld [vmem:[#allocation8 + $0x110] sm:$0xff]
    %v478 = vld [vmem:[#allocation8 + $0x118] sm:$0xff]
    %v479 = vld [vmem:[#allocation8 + $0x120] sm:$0xff]
    %v480 = vld [vmem:[#allocation8 + $0x128] sm:$0xff]
    %v481 = vld [vmem:[#allocation8 + $0x130] sm:$0xff]
    %v482 = vld [vmem:[#allocation8 + $0x138] sm:$0xff]
    %v483 = vld [vmem:[#allocation8 + $0x140] sm:$0xff]
    %v484 = vld [vmem:[#allocation8 + $0x148] sm:$0xff]
    %v485 = vld [vmem:[#allocation8 + $0x150] sm:$0xff]
    %v486 = vld [vmem:[#allocation8 + $0x158] sm:$0xff]
    %v487 = vld [vmem:[#allocation8 + $0x160] sm:$0xff]
    %v488 = vld [vmem:[#allocation8 + $0x168] sm:$0xff]
    %v489 = vld [vmem:[#allocation8 + $0x170] sm:$0xff]
    %v490 = vld [vmem:[#allocation8 + $0x178] sm:$0xff]
    %v539 = vunpack.c.l.b16 %v443
    %v540 = vunpack.c.h.b16 %v443
    %v541 = vunpack.c.l.b16 %v444
    %v542 = vunpack.c.h.b16 %v444
    %v543 = vunpack.c.l.b16 %v445
    %v544 = vunpack.c.h.b16 %v445
    %v545 = vunpack.c.l.b16 %v446
    %v546 = vunpack.c.h.b16 %v446
    %v547 = vunpack.c.l.b16 %v447
    %v548 = vunpack.c.h.b16 %v447
    %v549 = vunpack.c.l.b16 %v448
    %v550 = vunpack.c.h.b16 %v448
    %v551 = vunpack.c.l.b16 %v449
    %v552 = vunpack.c.h.b16 %v449
    %v553 = vunpack.c.l.b16 %v450
    %v554 = vunpack.c.h.b16 %v450
    %v555 = vunpack.c.l.b16 %v451
    %v556 = vunpack.c.h.b16 %v451
    %v557 = vunpack.c.l.b16 %v452
    %v558 = vunpack.c.h.b16 %v452
    %v559 = vunpack.c.l.b16 %v453
    %v560 = vunpack.c.h.b16 %v453
    %v561 = vunpack.c.l.b16 %v454
    %v562 = vunpack.c.h.b16 %v454
    %v563 = vunpack.c.l.b16 %v455
    %v564 = vunpack.c.h.b16 %v455
    %v565 = vunpack.c.l.b16 %v456
    %v566 = vunpack.c.h.b16 %v456
    %v567 = vunpack.c.l.b16 %v457
    %v568 = vunpack.c.h.b16 %v457
    %v569 = vunpack.c.l.b16 %v458
    %v570 = vunpack.c.h.b16 %v458
    %v571 = vunpack.c.l.b16 %v459
    %v572 = vunpack.c.h.b16 %v459
    %v573 = vunpack.c.l.b16 %v460
    %v574 = vunpack.c.h.b16 %v460
    %v575 = vunpack.c.l.b16 %v461
    %v576 = vunpack.c.h.b16 %v461
    %v577 = vunpack.c.l.b16 %v462
    %v578 = vunpack.c.h.b16 %v462
    %v579 = vunpack.c.l.b16 %v463
    %v580 = vunpack.c.h.b16 %v463
    %v581 = vunpack.c.l.b16 %v464
    %v582 = vunpack.c.h.b16 %v464
    %v583 = vunpack.c.l.b16 %v465
    %v584 = vunpack.c.h.b16 %v465
    %v585 = vunpack.c.l.b16 %v466
    %v586 = vunpack.c.h.b16 %v466
    %v587 = vunpack.c.l.b16 %v467
    %v588 = vunpack.c.h.b16 %v467
    %v589 = vunpack.c.l.b16 %v468
    %v590 = vunpack.c.h.b16 %v468
    %v591 = vunpack.c.l.b16 %v469
    %v592 = vunpack.c.h.b16 %v469
    %v593 = vunpack.c.l.b16 %v470
    %v594 = vunpack.c.h.b16 %v470
    %v595 = vunpack.c.l.b16 %v471
    %v596 = vunpack.c.h.b16 %v471
    %v597 = vunpack.c.l.b16 %v472
    %v598 = vunpack.c.h.b16 %v472
    %v599 = vunpack.c.l.b16 %v473
    %v600 = vunpack.c.h.b16 %v473
    %v601 = vunpack.c.l.b16 %v474
    %v602 = vunpack.c.h.b16 %v474
    %v603 = vunpack.c.l.b16 %v475
    %v604 = vunpack.c.h.b16 %v475
    %v605 = vunpack.c.l.b16 %v476
    %v606 = vunpack.c.h.b16 %v476
    %v607 = vunpack.c.l.b16 %v477
    %v608 = vunpack.c.h.b16 %v477
    %v609 = vunpack.c.l.b16 %v478
    %v610 = vunpack.c.h.b16 %v478
    %v611 = vunpack.c.l.b16 %v479
    %v612 = vunpack.c.h.b16 %v479
    %v613 = vunpack.c.l.b16 %v480
    %v614 = vunpack.c.h.b16 %v480
    %v615 = vunpack.c.l.b16 %v481
    %v616 = vunpack.c.h.b16 %v481
    %v617 = vunpack.c.l.b16 %v482
    %v618 = vunpack.c.h.b16 %v482
    %v619 = vunpack.c.l.b16 %v483
    %v620 = vunpack.c.h.b16 %v483
    %v621 = vunpack.c.l.b16 %v484
    %v622 = vunpack.c.h.b16 %v484
    %v623 = vunpack.c.l.b16 %v485
    %v624 = vunpack.c.h.b16 %v485
    %v625 = vunpack.c.l.b16 %v486
    %v626 = vunpack.c.h.b16 %v486
    %v627 = vunpack.c.l.b16 %v487
    %v628 = vunpack.c.h.b16 %v487
    %v629 = vunpack.c.l.b16 %v488
    %v630 = vunpack.c.h.b16 %v488
    %v631 = vunpack.c.l.b16 %v489
    %v632 = vunpack.c.h.b16 %v489
    %v633 = vunpack.c.l.b16 %v490
    %v634 = vunpack.c.h.b16 %v490
    %v635 = vpack.c.b16 %v545, %v539
    %v636 = vpack.c.b16 %v546, %v540
    %v637 = vpack.c.b16 %v547, %v541
    %v638 = vpack.c.b16 %v548, %v542
    %v639 = vpack.c.b16 %v549, %v543
    %v640 = vpack.c.b16 %v550, %v544
    %v641 = vpack.c.b16 %v557, %v551
    %v642 = vpack.c.b16 %v558, %v552
    %v643 = vpack.c.b16 %v559, %v553
    %v644 = vpack.c.b16 %v560, %v554
    %v645 = vpack.c.b16 %v561, %v555
    %v646 = vpack.c.b16 %v562, %v556
    %v647 = vpack.c.b16 %v569, %v563
    %v648 = vpack.c.b16 %v570, %v564
    %v649 = vpack.c.b16 %v571, %v565
    %v650 = vpack.c.b16 %v572, %v566
    %v651 = vpack.c.b16 %v573, %v567
    %v652 = vpack.c.b16 %v574, %v568
    %v653 = vpack.c.b16 %v581, %v575
    %v654 = vpack.c.b16 %v582, %v576
    %v655 = vpack.c.b16 %v583, %v577
    %v656 = vpack.c.b16 %v584, %v578
    %v657 = vpack.c.b16 %v585, %v579
    %v658 = vpack.c.b16 %v586, %v580
    %v659 = vpack.c.b16 %v593, %v587
    %v660 = vpack.c.b16 %v594, %v588
    %v661 = vpack.c.b16 %v595, %v589
    %v662 = vpack.c.b16 %v596, %v590
    %v663 = vpack.c.b16 %v597, %v591
    %v664 = vpack.c.b16 %v598, %v592
    %v665 = vpack.c.b16 %v605, %v599
    %v666 = vpack.c.b16 %v606, %v600
    %v667 = vpack.c.b16 %v607, %v601
    %v668 = vpack.c.b16 %v608, %v602
    %v669 = vpack.c.b16 %v609, %v603
    %v670 = vpack.c.b16 %v610, %v604
    %v671 = vpack.c.b16 %v617, %v611
    %v672 = vpack.c.b16 %v618, %v612
    %v673 = vpack.c.b16 %v619, %v613
    %v674 = vpack.c.b16 %v620, %v614
    %v675 = vpack.c.b16 %v621, %v615
    %v676 = vpack.c.b16 %v622, %v616
    %v677 = vpack.c.b16 %v629, %v623
    %v678 = vpack.c.b16 %v630, %v624
    %v679 = vpack.c.b16 %v631, %v625
    %v680 = vpack.c.b16 %v632, %v626
    %v681 = vpack.c.b16 %v633, %v627
    %v682 = vpack.c.b16 %v634, %v628
    %731 = vmatprep.subr.bf16.mxu0 %v636
    %732 = vmatpush1.bf16.msra.mxu0 %v635
    %733 = vmatprep.subr.bf16.mxu0 %v642
    %734 = vmatpush1.bf16.msra.mxu0 %v641
    %735 = vmatprep.subr.bf16.mxu0 %v648
    %736 = vmatpush1.bf16.msra.mxu0 %v647
    %737 = vmatprep.subr.bf16.mxu0 %v654
    %738 = vmatpush1.bf16.msra.mxu0 %v653
    %739 = vmatprep.subr.bf16.mxu0 %v660
    %740 = vmatpush1.bf16.msra.mxu0 %v659
    %741 = vmatprep.subr.bf16.mxu0 %v666
    %742 = vmatpush1.bf16.msra.mxu0 %v665
    %743 = vmatprep.subr.bf16.mxu0 %v672
    %744 = vmatpush1.bf16.msra.mxu0 %v671
    %745 = vmatprep.subr.bf16.mxu0 %v678
    %746 = vmatpush1.bf16.msra.mxu0 %v677
    %747 = vmatprep.subr.bf16.mxu0 0
    %748 = vmatpush1.bf16.msra.mxu0 0
    %749 = vmatprep.subr.bf16.mxu0 0
    %750 = vmatpush1.bf16.msra.mxu0 0
    %751 = vmatprep.subr.bf16.mxu0 0
    %752 = vmatpush1.bf16.msra.mxu0 0
    %753 = vmatprep.subr.bf16.mxu0 0
    %754 = vmatpush1.bf16.msra.mxu0 0
    %755 = vmatprep.subr.bf16.mxu0 0
    %756 = vmatpush1.bf16.msra.mxu0 0
    %757 = vmatprep.subr.bf16.mxu0 0
    %758 = vmatpush1.bf16.msra.mxu0 0
    %759 = vmatprep.subr.bf16.mxu0 0
    %760 = vmatpush1.bf16.msra.mxu0 0
    %761 = vmatprep.subr.bf16.mxu0 0
    %762 = vmatpush1.bf16.msra.mxu0 0
    %763 = vmatprep.mubr.bf16.mxu0 0
    %764 = vmatmul.mubr.bf16.gmra.mrb[0].mxu0 %v394
    %v765 = vpop.f32.mrb[0].mxu0
    %v766 = vadd.f32 0.0, %v765
    %v767 = vpop.f32.mrb[0].mxu0
    %v768 = vadd.f32 0.0, %v767
    %v769 = vpop.f32.mrb[0].mxu0
    %v770 = vpop.f32.mrb[0].mxu0
    %771 = vdwg.mxu0
    %772 = vmatprep.subr.bf16.mxu0 %v638
    %773 = vmatpush1.bf16.msra.mxu0 %v637
    %774 = vmatprep.subr.bf16.mxu0 %v644
    %775 = vmatpush1.bf16.msra.mxu0 %v643
    %776 = vmatprep.subr.bf16.mxu0 %v650
    %777 = vmatpush1.bf16.msra.mxu0 %v649
    %778 = vmatprep.subr.bf16.mxu0 %v656
    %779 = vmatpush1.bf16.msra.mxu0 %v655
    %780 = vmatprep.subr.bf16.mxu0 %v662
    %781 = vmatpush1.bf16.msra.mxu0 %v661
    %782 = vmatprep.subr.bf16.mxu0 %v668
    %783 = vmatpush1.bf16.msra.mxu0 %v667
    %784 = vmatprep.subr.bf16.mxu0 %v674
    %785 = vmatpush1.bf16.msra.mxu0 %v673
    %786 = vmatprep.subr.bf16.mxu0 %v680
    %787 = vmatpush1.bf16.msra.mxu0 %v679
    %788 = vmatprep.subr.bf16.mxu0 0
    %789 = vmatpush1.bf16.msra.mxu0 0
    %790 = vmatprep.subr.bf16.mxu0 0
    %791 = vmatpush1.bf16.msra.mxu0 0
    %792 = vmatprep.subr.bf16.mxu0 0
    %793 = vmatpush1.bf16.msra.mxu0 0
    %794 = vmatprep.subr.bf16.mxu0 0
    %795 = vmatpush1.bf16.msra.mxu0 0
    %796 = vmatprep.subr.bf16.mxu0 0
    %797 = vmatpush1.bf16.msra.mxu0 0
    %798 = vmatprep.subr.bf16.mxu0 0
    %799 = vmatpush1.bf16.msra.mxu0 0
    %800 = vmatprep.subr.bf16.mxu0 0
    %801 = vmatpush1.bf16.msra.mxu0 0
    %802 = vmatprep.subr.bf16.mxu0 0
    %803 = vmatpush1.bf16.msra.mxu0 0
    %804 = vmatprep.mubr.bf16.mxu0 0
    %805 = vmatmul.mubr.bf16.gmra.mrb[0].mxu0 %v394
    %v806 = vpop.f32.mrb[0].mxu0
    %v807 = vadd.f32 0.0, %v806
    %v808 = vpop.f32.mrb[0].mxu0
    %v809 = vadd.f32 0.0, %v808
    %v810 = vpop.f32.mrb[0].mxu0
    %v811 = vpop.f32.mrb[0].mxu0
    %812 = vdwg.mxu0
    %813 = vmatprep.subr.bf16.mxu0 %v640
    %814 = vmatpush1.bf16.msra.mxu0 %v639
    %815 = vmatprep.subr.bf16.mxu0 %v646
    %816 = vmatpush1.bf16.msra.mxu0 %v645
    %817 = vmatprep.subr.bf16.mxu0 %v652
    %818 = vmatpush1.bf16.msra.mxu0 %v651
    %819 = vmatprep.subr.bf16.mxu0 %v658
    %820 = vmatpush1.bf16.msra.mxu0 %v657
    %821 = vmatprep.subr.bf16.mxu0 %v664
    %822 = vmatpush1.bf16.msra.mxu0 %v663
    %823 = vmatprep.subr.bf16.mxu0 %v670
    %824 = vmatpush1.bf16.msra.mxu0 %v669
    %825 = vmatprep.subr.bf16.mxu0 %v676
    %826 = vmatpush1.bf16.msra.mxu0 %v675
    %827 = vmatprep.subr.bf16.mxu0 %v682
    %828 = vmatpush1.bf16.msra.mxu0 %v681
    %829 = vmatprep.subr.bf16.mxu0 0
    %830 = vmatpush1.bf16.msra.mxu0 0
    %831 = vmatprep.subr.bf16.mxu0 0
    %832 = vmatpush1.bf16.msra.mxu0 0
    %833 = vmatprep.subr.bf16.mxu0 0
    %834 = vmatpush1.bf16.msra.mxu0 0
    %835 = vmatprep.subr.bf16.mxu0 0
    %836 = vmatpush1.bf16.msra.mxu0 0
    %837 = vmatprep.subr.bf16.mxu0 0
    %838 = vmatpush1.bf16.msra.mxu0 0
    %839 = vmatprep.subr.bf16.mxu0 0
    %840 = vmatpush1.bf16.msra.mxu0 0
    %841 = vmatprep.subr.bf16.mxu0 0
    %842 = vmatpush1.bf16.msra.mxu0 0
    %843 = vmatprep.subr.bf16.mxu0 0
    %844 = vmatpush1.bf16.msra.mxu0 0
    %845 = vmatprep.mubr.bf16.mxu0 0
    %846 = vmatmul.mubr.bf16.gmra.mrb[0].mxu0 %v394
    %v847 = vpop.f32.mrb[0].mxu0
    %v848 = vadd.f32 0.0, %v847
    %v849 = vpop.f32.mrb[0].mxu0
    %v850 = vadd.f32 0.0, %v849
    %v851 = vpop.f32.mrb[0].mxu0
    %v852 = vpop.f32.mrb[0].mxu0
    %853 = vdwg.mxu0
    %v902 = vunpack.c.l.b16 %v395
    %v903 = vunpack.c.h.b16 %v395
    %v904 = vunpack.c.l.b16 %v396
    %v905 = vunpack.c.h.b16 %v396
    %v906 = vunpack.c.l.b16 %v397
    %v907 = vunpack.c.h.b16 %v397
    %v908 = vunpack.c.l.b16 %v398
    %v909 = vunpack.c.h.b16 %v398
    %v910 = vunpack.c.l.b16 %v399
    %v911 = vunpack.c.h.b16 %v399
    %v912 = vunpack.c.l.b16 %v400
    %v913 = vunpack.c.h.b16 %v400
    %v914 = vunpack.c.l.b16 %v401
    %v915 = vunpack.c.h.b16 %v401
    %v916 = vunpack.c.l.b16 %v402
    %v917 = vunpack.c.h.b16 %v402
    %v918 = vunpack.c.l.b16 %v403
    %v919 = vunpack.c.h.b16 %v403
    %v920 = vunpack.c.l.b16 %v404
    %v921 = vunpack.c.h.b16 %v404
    %v922 = vunpack.c.l.b16 %v405
    %v923 = vunpack.c.h.b16 %v405
    %v924 = vunpack.c.l.b16 %v406
    %v925 = vunpack.c.h.b16 %v406
    %v926 = vunpack.c.l.b16 %v407
    %v927 = vunpack.c.h.b16 %v407
    %v928 = vunpack.c.l.b16 %v408
    %v929 = vunpack.c.h.b16 %v408
    %v930 = vunpack.c.l.b16 %v409
    %v931 = vunpack.c.h.b16 %v409
    %v932 = vunpack.c.l.b16 %v410
    %v933 = vunpack.c.h.b16 %v410
    %v934 = vunpack.c.l.b16 %v411
    %v935 = vunpack.c.h.b16 %v411
    %v936 = vunpack.c.l.b16 %v412
    %v937 = vunpack.c.h.b16 %v412
    %v938 = vunpack.c.l.b16 %v413
    %v939 = vunpack.c.h.b16 %v413
    %v940 = vunpack.c.l.b16 %v414
    %v941 = vunpack.c.h.b16 %v414
    %v942 = vunpack.c.l.b16 %v415
    %v943 = vunpack.c.h.b16 %v415
    %v944 = vunpack.c.l.b16 %v416
    %v945 = vunpack.c.h.b16 %v416
    %v946 = vunpack.c.l.b16 %v417
    %v947 = vunpack.c.h.b16 %v417
    %v948 = vunpack.c.l.b16 %v418
    %v949 = vunpack.c.h.b16 %v418
    %v950 = vunpack.c.l.b16 %v419
    %v951 = vunpack.c.h.b16 %v419
    %v952 = vunpack.c.l.b16 %v420
    %v953 = vunpack.c.h.b16 %v420
    %v954 = vunpack.c.l.b16 %v421
    %v955 = vunpack.c.h.b16 %v421
    %v956 = vunpack.c.l.b16 %v422
    %v957 = vunpack.c.h.b16 %v422
    %v958 = vunpack.c.l.b16 %v423
    %v959 = vunpack.c.h.b16 %v423
    %v960 = vunpack.c.l.b16 %v424
    %v961 = vunpack.c.h.b16 %v424
    %v962 = vunpack.c.l.b16 %v425
    %v963 = vunpack.c.h.b16 %v425
    %v964 = vunpack.c.l.b16 %v426
    %v965 = vunpack.c.h.b16 %v426
    %v966 = vunpack.c.l.b16 %v427
    %v967 = vunpack.c.h.b16 %v427
    %v968 = vunpack.c.l.b16 %v428
    %v969 = vunpack.c.h.b16 %v428
    %v970 = vunpack.c.l.b16 %v429
    %v971 = vunpack.c.h.b16 %v429
    %v972 = vunpack.c.l.b16 %v430
    %v973 = vunpack.c.h.b16 %v430
    %v974 = vunpack.c.l.b16 %v431
    %v975 = vunpack.c.h.b16 %v431
    %v976 = vunpack.c.l.b16 %v432
    %v977 = vunpack.c.h.b16 %v432
    %v978 = vunpack.c.l.b16 %v433
    %v979 = vunpack.c.h.b16 %v433
    %v980 = vunpack.c.l.b16 %v434
    %v981 = vunpack.c.h.b16 %v434
    %v982 = vunpack.c.l.b16 %v435
    %v983 = vunpack.c.h.b16 %v435
    %v984 = vunpack.c.l.b16 %v436
    %v985 = vunpack.c.h.b16 %v436
    %v986 = vunpack.c.l.b16 %v437
    %v987 = vunpack.c.h.b16 %v437
    %v988 = vunpack.c.l.b16 %v438
    %v989 = vunpack.c.h.b16 %v438
    %v990 = vunpack.c.l.b16 %v439
    %v991 = vunpack.c.h.b16 %v439
    %v992 = vunpack.c.l.b16 %v440
    %v993 = vunpack.c.h.b16 %v440
    %v994 = vunpack.c.l.b16 %v441
    %v995 = vunpack.c.h.b16 %v441
    %v996 = vunpack.c.l.b16 %v442
    %v997 = vunpack.c.h.b16 %v442
    %v998 = vpack.c.b16 %v908, %v902
    %v999 = vpack.c.b16 %v909, %v903
    %v1000 = vpack.c.b16 %v910, %v904
    %v1001 = vpack.c.b16 %v911, %v905
    %v1002 = vpack.c.b16 %v912, %v906
    %v1003 = vpack.c.b16 %v913, %v907
    %v1004 = vpack.c.b16 %v920, %v914
    %v1005 = vpack.c.b16 %v921, %v915
    %v1006 = vpack.c.b16 %v922, %v916
    %v1007 = vpack.c.b16 %v923, %v917
    %v1008 = vpack.c.b16 %v924, %v918
    %v1009 = vpack.c.b16 %v925, %v919
    %v1010 = vpack.c.b16 %v932, %v926
    %v1011 = vpack.c.b16 %v933, %v927
    %v1012 = vpack.c.b16 %v934, %v928
    %v1013 = vpack.c.b16 %v935, %v929
    %v1014 = vpack.c.b16 %v936, %v930
    %v1015 = vpack.c.b16 %v937, %v931
    %v1016 = vpack.c.b16 %v944, %v938
    %v1017 = vpack.c.b16 %v945, %v939
    %v1018 = vpack.c.b16 %v946, %v940
    %v1019 = vpack.c.b16 %v947, %v941
    %v1020 = vpack.c.b16 %v948, %v942
    %v1021 = vpack.c.b16 %v949, %v943
    %v1022 = vpack.c.b16 %v956, %v950
    %v1023 = vpack.c.b16 %v957, %v951
    %v1024 = vpack.c.b16 %v958, %v952
    %v1025 = vpack.c.b16 %v959, %v953
    %v1026 = vpack.c.b16 %v960, %v954
    %v1027 = vpack.c.b16 %v961, %v955
    %v1028 = vpack.c.b16 %v968, %v962
    %v1029 = vpack.c.b16 %v969, %v963
    %v1030 = vpack.c.b16 %v970, %v964
    %v1031 = vpack.c.b16 %v971, %v965
    %v1032 = vpack.c.b16 %v972, %v966
    %v1033 = vpack.c.b16 %v973, %v967
    %v1034 = vpack.c.b16 %v980, %v974
    %v1035 = vpack.c.b16 %v981, %v975
    %v1036 = vpack.c.b16 %v982, %v976
    %v1037 = vpack.c.b16 %v983, %v977
    %v1038 = vpack.c.b16 %v984, %v978
    %v1039 = vpack.c.b16 %v985, %v979
    %v1040 = vpack.c.b16 %v992, %v986
    %v1041 = vpack.c.b16 %v993, %v987
    %v1042 = vpack.c.b16 %v994, %v988
    %v1043 = vpack.c.b16 %v995, %v989
    %v1044 = vpack.c.b16 %v996, %v990
    %v1045 = vpack.c.b16 %v997, %v991
    %1094 = vmatprep.subr.bf16.mxu0 %v999
    %1095 = vmatpush1.bf16.msra.mxu0 %v998
    %1096 = vmatprep.subr.bf16.mxu0 %v1005
    %1097 = vmatpush1.bf16.msra.mxu0 %v1004
    %1098 = vmatprep.subr.bf16.mxu0 %v1011
    %1099 = vmatpush1.bf16.msra.mxu0 %v1010
    %1100 = vmatprep.subr.bf16.mxu0 %v1017
    %1101 = vmatpush1.bf16.msra.mxu0 %v1016
    %1102 = vmatprep.subr.bf16.mxu0 %v1023
    %1103 = vmatpush1.bf16.msra.mxu0 %v1022
    %1104 = vmatprep.subr.bf16.mxu0 %v1029
    %1105 = vmatpush1.bf16.msra.mxu0 %v1028
    %1106 = vmatprep.subr.bf16.mxu0 %v1035
    %1107 = vmatpush1.bf16.msra.mxu0 %v1034
    %1108 = vmatprep.subr.bf16.mxu0 %v1041
    %1109 = vmatpush1.bf16.msra.mxu0 %v1040
    %1110 = vmatprep.subr.bf16.mxu0 0
    %1111 = vmatpush1.bf16.msra.mxu0 0
    %1112 = vmatprep.subr.bf16.mxu0 0
    %1113 = vmatpush1.bf16.msra.mxu0 0
    %1114 = vmatprep.subr.bf16.mxu0 0
    %1115 = vmatpush1.bf16.msra.mxu0 0
    %1116 = vmatprep.subr.bf16.mxu0 0
    %1117 = vmatpush1.bf16.msra.mxu0 0
    %1118 = vmatprep.subr.bf16.mxu0 0
    %1119 = vmatpush1.bf16.msra.mxu0 0
    %1120 = vmatprep.subr.bf16.mxu0 0
    %1121 = vmatpush1.bf16.msra.mxu0 0
    %1122 = vmatprep.subr.bf16.mxu0 0
    %1123 = vmatpush1.bf16.msra.mxu0 0
    %1124 = vmatprep.subr.bf16.mxu0 0
    %1125 = vmatpush1.bf16.msra.mxu0 0
    %1126 = vmatprep.mubr.bf16.mxu0 0
    %1127 = vmatmul.mubr.bf16.gmra.mrb[0].mxu0 %v381
    %v1128 = vpop.f32.mrb[0].mxu0
    %v1129 = vadd.f32 %v766, %v1128
    %v1130 = vpop.f32.mrb[0].mxu0
    %v1131 = vadd.f32 %v768, %v1130
    %v1132 = vpop.f32.mrb[0].mxu0
    %v1133 = vpop.f32.mrb[0].mxu0
    %1134 = vdwg.mxu0
    %1135 = vmatprep.subr.bf16.mxu0 %v1001
    %1136 = vmatpush1.bf16.msra.mxu0 %v1000
    %1137 = vmatprep.subr.bf16.mxu0 %v1007
    %1138 = vmatpush1.bf16.msra.mxu0 %v1006
    %1139 = vmatprep.subr.bf16.mxu0 %v1013
    %1140 = vmatpush1.bf16.msra.mxu0 %v1012
    %1141 = vmatprep.subr.bf16.mxu0 %v1019
    %1142 = vmatpush1.bf16.msra.mxu0 %v1018
    %1143 = vmatprep.subr.bf16.mxu0 %v1025
    %1144 = vmatpush1.bf16.msra.mxu0 %v1024
    %1145 = vmatprep.subr.bf16.mxu0 %v1031
    %1146 = vmatpush1.bf16.msra.mxu0 %v1030
    %1147 = vmatprep.subr.bf16.mxu0 %v1037
    %1148 = vmatpush1.bf16.msra.mxu0 %v1036
    %1149 = vmatprep.subr.bf16.mxu0 %v1043
    %1150 = vmatpush1.bf16.msra.mxu0 %v1042
    %1151 = vmatprep.subr.bf16.mxu0 0
    %1152 = vmatpush1.bf16.msra.mxu0 0
    %1153 = vmatprep.subr.bf16.mxu0 0
    %1154 = vmatpush1.bf16.msra.mxu0 0
    %1155 = vmatprep.subr.bf16.mxu0 0
    %1156 = vmatpush1.bf16.msra.mxu0 0
    %1157 = vmatprep.subr.bf16.mxu0 0
    %1158 = vmatpush1.bf16.msra.mxu0 0
    %1159 = vmatprep.subr.bf16.mxu0 0
    %1160 = vmatpush1.bf16.msra.mxu0 0
    %1161 = vmatprep.subr.bf16.mxu0 0
    %1162 = vmatpush1.bf16.msra.mxu0 0
    %1163 = vmatprep.subr.bf16.mxu0 0
    %1164 = vmatpush1.bf16.msra.mxu0 0
    %1165 = vmatprep.subr.bf16.mxu0 0
    %1166 = vmatpush1.bf16.msra.mxu0 0
    %1167 = vmatprep.mubr.bf16.mxu0 0
    %1168 = vmatmul.mubr.bf16.gmra.mrb[0].mxu0 %v381
    %v1169 = vpop.f32.mrb[0].mxu0
    %v1170 = vadd.f32 %v807, %v1169
    %v1171 = vpop.f32.mrb[0].mxu0
    %v1172 = vadd.f32 %v809, %v1171
    %v1173 = vpop.f32.mrb[0].mxu0
    %v1174 = vpop.f32.mrb[0].mxu0
    %1175 = vdwg.mxu0
    %1176 = vmatprep.subr.bf16.mxu0 %v1003
    %1177 = vmatpush1.bf16.msra.mxu0 %v1002
    %1178 = vmatprep.subr.bf16.mxu0 %v1009
    %1179 = vmatpush1.bf16.msra.mxu0 %v1008
    %1180 = vmatprep.subr.bf16.mxu0 %v1015
    %1181 = vmatpush1.bf16.msra.mxu0 %v1014
    %1182 = vmatprep.subr.bf16.mxu0 %v1021
    %1183 = vmatpush1.bf16.msra.mxu0 %v1020
    %1184 = vmatprep.subr.bf16.mxu0 %v1027
    %1185 = vmatpush1.bf16.msra.mxu0 %v1026
    %1186 = vmatprep.subr.bf16.mxu0 %v1033
    %1187 = vmatpush1.bf16.msra.mxu0 %v1032
    %1188 = vmatprep.subr.bf16.mxu0 %v1039
    %1189 = vmatpush1.bf16.msra.mxu0 %v1038
    %1190 = vmatprep.subr.bf16.mxu0 %v1045
    %1191 = vmatpush1.bf16.msra.mxu0 %v1044
    %1192 = vmatprep.subr.bf16.mxu0 0
    %1193 = vmatpush1.bf16.msra.mxu0 0
    %1194 = vmatprep.subr.bf16.mxu0 0
    %1195 = vmatpush1.bf16.msra.mxu0 0
    %1196 = vmatprep.subr.bf16.mxu0 0
    %1197 = vmatpush1.bf16.msra.mxu0 0
    %1198 = vmatprep.subr.bf16.mxu0 0
    %1199 = vmatpush1.bf16.msra.mxu0 0
    %1200 = vmatprep.subr.bf16.mxu0 0
    %1201 = vmatpush1.bf16.msra.mxu0 0
    %1202 = vmatprep.subr.bf16.mxu0 0
    %1203 = vmatpush1.bf16.msra.mxu0 0
    %1204 = vmatprep.subr.bf16.mxu0 0
    %1205 = vmatpush1.bf16.msra.mxu0 0
    %1206 = vmatprep.subr.bf16.mxu0 0
    %1207 = vmatpush1.bf16.msra.mxu0 0
    %1208 = vmatprep.mubr.bf16.mxu0 0
    %1209 = vmatmul.mubr.bf16.gmra.mrb[0].mxu0 %v381
    %v1210 = vpop.f32.mrb[0].mxu0
    %v1211 = vadd.f32 %v848, %v1210
    %v1212 = vpop.f32.mrb[0].mxu0
    %v1213 = vadd.f32 %v850, %v1212
    %v1214 = vpop.f32.mrb[0].mxu0
    %v1215 = vpop.f32.mrb[0].mxu0
    %1216 = vdwg.mxu0
    %v1217 = vld [vmem:[%s5] sm:$0x3f]
    %v1219 = vlaneseq
    %v1220 = vshrl.u32 %v1219, 7
    %v1221 = vsub.s32 0, %v1220
    %v1222 = vrot.slane %v1217, %v1221
    %v1223 = vlaneseq
    %v1224 = vshrl.u32 %v1223, 7
    %v1225 = vsub.s32 1, %v1224
    %v1226 = vrot.slane %v1217, %v1225
    %v1227 = vlaneseq
    %v1228 = vshrl.u32 %v1227, 7
    %v1229 = vsub.s32 2, %v1228
    %v1230 = vrot.slane %v1217, %v1229
    %v1231 = vlaneseq
    %v1232 = vshrl.u32 %v1231, 7
    %v1233 = vsub.s32 3, %v1232
    %v1234 = vrot.slane %v1217, %v1233
    %v1235 = vlaneseq
    %v1236 = vshrl.u32 %v1235, 7
    %v1237 = vsub.s32 4, %v1236
    %v1238 = vrot.slane %v1217, %v1237
    %v1239 = vlaneseq
    %v1240 = vshrl.u32 %v1239, 7
    %v1241 = vsub.s32 5, %v1240
    %v1242 = vrot.slane %v1217, %v1241
    %v1249 = vadd.f32 %v1129, %v1222
    %v1250 = vadd.f32 %v1131, %v1226
    %v1251 = vadd.f32 %v1170, %v1230
    %v1252 = vadd.f32 %v1172, %v1234
    %v1253 = vadd.f32 %v1211, %v1238
    %v1254 = vadd.f32 %v1213, %v1242
    %v1255 = vmul.f32 %v1249, 0.5
    %v1256 = vtanh.pop %v1255
    %v1257 = vmul.f32 %v1256, 0.5
    %v1258 = vadd.f32 %v1257, 0.5
    %v1259 = vtanh.pop %v1250
    %v1260 = vmul.f32 %v1251, 0.5
    %v1261 = vtanh.pop %v1260
    %v1262 = vmul.f32 %v1261, 0.5
    %v1263 = vadd.f32 %v1262, 0.5
    %v1264 = vmul.f32 %v1258, %v1259
    %v1265 = vtanh.pop %v1264
    %v1266 = vmul.f32 %v1263, %v1265
    %v1267 = vpack.c.bf16 %v1266, %v1266
    %v1268 = vmul.f32 %v1252, 0.5
    %v1269 = vtanh.pop %v1268
    %v1270 = vmul.f32 %v1269, 0.5
    %v1271 = vadd.f32 %v1270, 0.5
    %v1272 = vtanh.pop %v1253
    %v1273 = vmul.f32 %v1254, 0.5
    %v1274 = vtanh.pop %v1273
    %v1275 = vmul.f32 %v1274, 0.5
    %v1276 = vadd.f32 %v1275, 0.5
    %v1277 = vmul.f32 %v1271, %v1272
    %v1278 = vtanh.pop %v1277
    %v1279 = vmul.f32 %v1276, %v1278
    %v1280 = vpack.c.bf16 %v1279, %v1279
    %v1281 = vld [vmem:[#allocation10] sm:$0xf]
    %v1282 = vld [vmem:[#allocation10 + $0x4] sm:$0xf]
    %v1283 = vld [vmem:[#allocation10 + $0x8] sm:$0xf]
    %v1284 = vld [vmem:[#allocation10 + $0xc] sm:$0xf]
    %v1285 = vld [vmem:[#allocation10 + $0x10] sm:$0xf]
    %v1286 = vld [vmem:[#allocation10 + $0x14] sm:$0xf]
    %v1287 = vld [vmem:[#allocation10 + $0x18] sm:$0xf]
    %v1288 = vld [vmem:[#allocation10 + $0x1c] sm:$0xf]
    %v1289 = vld [vmem:[#allocation10 + $0x20] sm:$0xf]
    %v1290 = vld [vmem:[#allocation10 + $0x24] sm:$0xf]
    %v1291 = vld [vmem:[#allocation10 + $0x28] sm:$0xf]
    %v1292 = vld [vmem:[#allocation10 + $0x2c] sm:$0xf]
    %v1293 = vld [vmem:[#allocation10 + $0x30] sm:$0xf]
    %v1294 = vld [vmem:[#allocation10 + $0x34] sm:$0xf]
    %v1295 = vld [vmem:[#allocation10 + $0x38] sm:$0xf]
    %v1296 = vld [vmem:[#allocation10 + $0x3c] sm:$0xf]
    %v1297 = vld [vmem:[#allocation11] sm:$0xf]
    %v1298 = vld [vmem:[#allocation11 + $0x4] sm:$0xf]
    %v1299 = vld [vmem:[#allocation11 + $0x8] sm:$0xf]
    %v1300 = vld [vmem:[#allocation11 + $0xc] sm:$0xf]
    %v1301 = vld [vmem:[#allocation11 + $0x10] sm:$0xf]
    %v1302 = vld [vmem:[#allocation11 + $0x14] sm:$0xf]
    %v1303 = vld [vmem:[#allocation11 + $0x18] sm:$0xf]
    %v1304 = vld [vmem:[#allocation11 + $0x1c] sm:$0xf]
    %v1305 = vld [vmem:[#allocation11 + $0x20] sm:$0xf]
    %v1306 = vld [vmem:[#allocation11 + $0x24] sm:$0xf]
    %v1307 = vld [vmem:[#allocation11 + $0x28] sm:$0xf]
    %v1308 = vld [vmem:[#allocation11 + $0x2c] sm:$0xf]
    %v1309 = vld [vmem:[#allocation11 + $0x30] sm:$0xf]
    %v1310 = vld [vmem:[#allocation11 + $0x34] sm:$0xf]
    %v1311 = vld [vmem:[#allocation11 + $0x38] sm:$0xf]
    %v1312 = vld [vmem:[#allocation11 + $0x3c] sm:$0xf]
    %v1329 = vunpack.c.l.b16 %v1297
    %v1330 = vunpack.c.l.b16 %v1298
    %v1331 = vunpack.c.l.b16 %v1299
    %v1332 = vunpack.c.l.b16 %v1300
    %v1333 = vunpack.c.l.b16 %v1301
    %v1334 = vunpack.c.l.b16 %v1302
    %v1335 = vunpack.c.l.b16 %v1303
    %v1336 = vunpack.c.l.b16 %v1304
    %v1337 = vunpack.c.l.b16 %v1305
    %v1338 = vunpack.c.l.b16 %v1306
    %v1339 = vunpack.c.l.b16 %v1307
    %v1340 = vunpack.c.l.b16 %v1308
    %v1341 = vunpack.c.l.b16 %v1309
    %v1342 = vunpack.c.l.b16 %v1310
    %v1343 = vunpack.c.l.b16 %v1311
    %v1344 = vunpack.c.l.b16 %v1312
    %v1345 = vpack.c.b16 %v1330, %v1329
    %v1346 = vpack.c.b16 %v1332, %v1331
    %v1347 = vpack.c.b16 %v1334, %v1333
    %v1348 = vpack.c.b16 %v1336, %v1335
    %v1349 = vpack.c.b16 %v1338, %v1337
    %v1350 = vpack.c.b16 %v1340, %v1339
    %v1351 = vpack.c.b16 %v1342, %v1341
    %v1352 = vpack.c.b16 %v1344, %v1343
    %1361 = vmatprep.subr.bf16.mxu0 0
    %1362 = vmatpush1.bf16.msra.mxu0 %v1345
    %1363 = vmatprep.subr.bf16.mxu0 0
    %1364 = vmatpush1.bf16.msra.mxu0 %v1346
    %1365 = vmatprep.subr.bf16.mxu0 0
    %1366 = vmatpush1.bf16.msra.mxu0 %v1347
    %1367 = vmatprep.subr.bf16.mxu0 0
    %1368 = vmatpush1.bf16.msra.mxu0 %v1348
    %1369 = vmatprep.subr.bf16.mxu0 0
    %1370 = vmatpush1.bf16.msra.mxu0 %v1349
    %1371 = vmatprep.subr.bf16.mxu0 0
    %1372 = vmatpush1.bf16.msra.mxu0 %v1350
    %1373 = vmatprep.subr.bf16.mxu0 0
    %1374 = vmatpush1.bf16.msra.mxu0 %v1351
    %1375 = vmatprep.subr.bf16.mxu0 0
    %1376 = vmatpush1.bf16.msra.mxu0 %v1352
    %1377 = vmatprep.subr.bf16.mxu0 0
    %1378 = vmatpush1.bf16.msra.mxu0 0
    %1379 = vmatprep.subr.bf16.mxu0 0
    %1380 = vmatpush1.bf16.msra.mxu0 0
    %1381 = vmatprep.subr.bf16.mxu0 0
    %1382 = vmatpush1.bf16.msra.mxu0 0
    %1383 = vmatprep.subr.bf16.mxu0 0
    %1384 = vmatpush1.bf16.msra.mxu0 0
    %1385 = vmatprep.subr.bf16.mxu0 0
    %1386 = vmatpush1.bf16.msra.mxu0 0
    %1387 = vmatprep.subr.bf16.mxu0 0
    %1388 = vmatpush1.bf16.msra.mxu0 0
    %1389 = vmatprep.subr.bf16.mxu0 0
    %1390 = vmatpush1.bf16.msra.mxu0 0
    %1391 = vmatprep.subr.bf16.mxu0 0
    %1392 = vmatpush1.bf16.msra.mxu0 0
    %1393 = vmatprep.mubr.bf16.mxu0 0
    %1394 = vmatmul.mubr.bf16.gmra.mrb[0].mxu0 %v1280
    %v1395 = vpop.f32.mrb[0].mxu0
    %v1396 = vadd.f32 0.0, %v1395
    %v1397 = vpop.f32.mrb[0].mxu0
    %v1398 = vpop.f32.mrb[0].mxu0
    %v1399 = vpop.f32.mrb[0].mxu0
    %1400 = vdwg.mxu0
    %v1417 = vunpack.c.l.b16 %v1281
    %v1418 = vunpack.c.l.b16 %v1282
    %v1419 = vunpack.c.l.b16 %v1283
    %v1420 = vunpack.c.l.b16 %v1284
    %v1421 = vunpack.c.l.b16 %v1285
    %v1422 = vunpack.c.l.b16 %v1286
    %v1423 = vunpack.c.l.b16 %v1287
    %v1424 = vunpack.c.l.b16 %v1288
    %v1425 = vunpack.c.l.b16 %v1289
    %v1426 = vunpack.c.l.b16 %v1290
    %v1427 = vunpack.c.l.b16 %v1291
    %v1428 = vunpack.c.l.b16 %v1292
    %v1429 = vunpack.c.l.b16 %v1293
    %v1430 = vunpack.c.l.b16 %v1294
    %v1431 = vunpack.c.l.b16 %v1295
    %v1432 = vunpack.c.l.b16 %v1296
    %v1433 = vpack.c.b16 %v1418, %v1417
    %v1434 = vpack.c.b16 %v1420, %v1419
    %v1435 = vpack.c.b16 %v1422, %v1421
    %v1436 = vpack.c.b16 %v1424, %v1423
    %v1437 = vpack.c.b16 %v1426, %v1425
    %v1438 = vpack.c.b16 %v1428, %v1427
    %v1439 = vpack.c.b16 %v1430, %v1429
    %v1440 = vpack.c.b16 %v1432, %v1431
    %1449 = vmatprep.subr.bf16.mxu0 0
    %1450 = vmatpush1.bf16.msra.mxu0 %v1433
    %1451 = vmatprep.subr.bf16.mxu0 0
    %1452 = vmatpush1.bf16.msra.mxu0 %v1434
    %1453 = vmatprep.subr.bf16.mxu0 0
    %1454 = vmatpush1.bf16.msra.mxu0 %v1435
    %1455 = vmatprep.subr.bf16.mxu0 0
    %1456 = vmatpush1.bf16.msra.mxu0 %v1436
    %1457 = vmatprep.subr.bf16.mxu0 0
    %1458 = vmatpush1.bf16.msra.mxu0 %v1437
    %1459 = vmatprep.subr.bf16.mxu0 0
    %1460 = vmatpush1.bf16.msra.mxu0 %v1438
    %1461 = vmatprep.subr.bf16.mxu0 0
    %1462 = vmatpush1.bf16.msra.mxu0 %v1439
    %1463 = vmatprep.subr.bf16.mxu0 0
    %1464 = vmatpush1.bf16.msra.mxu0 %v1440
    %1465 = vmatprep.subr.bf16.mxu0 0
    %1466 = vmatpush1.bf16.msra.mxu0 0
    %1467 = vmatprep.subr.bf16.mxu0 0
    %1468 = vmatpush1.bf16.msra.mxu0 0
    %1469 = vmatprep.subr.bf16.mxu0 0
    %1470 = vmatpush1.bf16.msra.mxu0 0
    %1471 = vmatprep.subr.bf16.mxu0 0
    %1472 = vmatpush1.bf16.msra.mxu0 0
    %1473 = vmatprep.subr.bf16.mxu0 0
    %1474 = vmatpush1.bf16.msra.mxu0 0
    %1475 = vmatprep.subr.bf16.mxu0 0
    %1476 = vmatpush1.bf16.msra.mxu0 0
    %1477 = vmatprep.subr.bf16.mxu0 0
    %1478 = vmatpush1.bf16.msra.mxu0 0
    %1479 = vmatprep.subr.bf16.mxu0 0
    %1480 = vmatpush1.bf16.msra.mxu0 0
    %1481 = vmatprep.mubr.bf16.mxu0 0
    %1482 = vmatmul.mubr.bf16.gmra.mrb[0].mxu0 %v1267
    %v1483 = vpop.f32.mrb[0].mxu0
    %v1484 = vadd.f32 %v1396, %v1483
    %v1485 = vpop.f32.mrb[0].mxu0
    %v1486 = vpop.f32.mrb[0].mxu0
    %v1487 = vpop.f32.mrb[0].mxu0
    %1488 = vdwg.mxu0
    %v1489 = vld [vmem:[%s8] sm:$0x1]
    %v1491 = vlaneseq
    %v1492 = vshrl.u32 %v1491, 7
    %v1493 = vsub.s32 0, %v1492
    %v1494 = vrot.slane %v1489, %v1493
    %v1496 = vadd.f32 %v1484, %v1494
    %v1497 = vmax.f32 %v1496, 0.0
    %v1498 = vpack.c.bf16 %v1497, %v1497
    %v1499 = vld [vmem:[#allocation13] sm:$0xf]
    %v1500 = vld [vmem:[#allocation13 + $0x4] sm:$0xf]
    %v1501 = vld [vmem:[#allocation13 + $0x8] sm:$0xf]
    %v1502 = vld [vmem:[#allocation13 + $0xc] sm:$0xf]
    %v1503 = vld [vmem:[#allocation13 + $0x10] sm:$0xf]
    %v1504 = vld [vmem:[#allocation13 + $0x14] sm:$0xf]
    %v1505 = vld [vmem:[#allocation13 + $0x18] sm:$0xf]
    %v1506 = vld [vmem:[#allocation13 + $0x1c] sm:$0xf]
    %v1507 = vld [vmem:[#allocation13 + $0x20] sm:$0xf]
    %v1508 = vld [vmem:[#allocation13 + $0x24] sm:$0xf]
    %v1509 = vld [vmem:[#allocation13 + $0x28] sm:$0xf]
    %v1510 = vld [vmem:[#allocation13 + $0x2c] sm:$0xf]
    %v1511 = vld [vmem:[#allocation13 + $0x30] sm:$0xf]
    %v1512 = vld [vmem:[#allocation13 + $0x34] sm:$0xf]
    %v1513 = vld [vmem:[#allocation13 + $0x38] sm:$0xf]
    %v1514 = vld [vmem:[#allocation13 + $0x3c] sm:$0xf]
    %v1515 = vld [vmem:[%s10] sm:$0x1]
    %v1517 = vlaneseq
    %v1518 = vshrl.u32 %v1517, 7
    %v1519 = vsub.s32 0, %v1518
    %v1520 = vrot.slane %v1515, %v1519
    %v1538 = vunpack.c.l.b16 %v1499
    %v1539 = vunpack.c.l.b16 %v1500
    %v1540 = vunpack.c.l.b16 %v1501
    %v1541 = vunpack.c.l.b16 %v1502
    %v1542 = vunpack.c.l.b16 %v1503
    %v1543 = vunpack.c.l.b16 %v1504
    %v1544 = vunpack.c.l.b16 %v1505
    %v1545 = vunpack.c.l.b16 %v1506
    %v1546 = vunpack.c.l.b16 %v1507
    %v1547 = vunpack.c.l.b16 %v1508
    %v1548 = vunpack.c.l.b16 %v1509
    %v1549 = vunpack.c.l.b16 %v1510
    %v1550 = vunpack.c.l.b16 %v1511
    %v1551 = vunpack.c.l.b16 %v1512
    %v1552 = vunpack.c.l.b16 %v1513
    %v1553 = vunpack.c.l.b16 %v1514
    %v1554 = vpack.c.b16 %v1539, %v1538
    %v1555 = vpack.c.b16 %v1541, %v1540
    %v1556 = vpack.c.b16 %v1543, %v1542
    %v1557 = vpack.c.b16 %v1545, %v1544
    %v1558 = vpack.c.b16 %v1547, %v1546
    %v1559 = vpack.c.b16 %v1549, %v1548
    %v1560 = vpack.c.b16 %v1551, %v1550
    %v1561 = vpack.c.b16 %v1553, %v1552
    %1570 = vmatprep.subr.bf16.mxu0 0
    %1571 = vmatpush1.bf16.msra.mxu0 %v1554
    %1572 = vmatprep.subr.bf16.mxu0 0
    %1573 = vmatpush1.bf16.msra.mxu0 %v1555
    %1574 = vmatprep.subr.bf16.mxu0 0
    %1575 = vmatpush1.bf16.msra.mxu0 %v1556
    %1576 = vmatprep.subr.bf16.mxu0 0
    %1577 = vmatpush1.bf16.msra.mxu0 %v1557
    %1578 = vmatprep.subr.bf16.mxu0 0
    %1579 = vmatpush1.bf16.msra.mxu0 %v1558
    %1580 = vmatprep.subr.bf16.mxu0 0
    %1581 = vmatpush1.bf16.msra.mxu0 %v1559
    %1582 = vmatprep.subr.bf16.mxu0 0
    %1583 = vmatpush1.bf16.msra.mxu0 %v1560
    %1584 = vmatprep.subr.bf16.mxu0 0
    %1585 = vmatpush1.bf16.msra.mxu0 %v1561
    %1586 = vmatprep.subr.bf16.mxu0 0
    %1587 = vmatpush1.bf16.msra.mxu0 0
    %1588 = vmatprep.subr.bf16.mxu0 0
    %1589 = vmatpush1.bf16.msra.mxu0 0
    %1590 = vmatprep.subr.bf16.mxu0 0
    %1591 = vmatpush1.bf16.msra.mxu0 0
    %1592 = vmatprep.subr.bf16.mxu0 0
    %1593 = vmatpush1.bf16.msra.mxu0 0
    %1594 = vmatprep.subr.bf16.mxu0 0
    %1595 = vmatpush1.bf16.msra.mxu0 0
    %1596 = vmatprep.subr.bf16.mxu0 0
    %1597 = vmatpush1.bf16.msra.mxu0 0
    %1598 = vmatprep.subr.bf16.mxu0 0
    %1599 = vmatpush1.bf16.msra.mxu0 0
    %1600 = vmatprep.subr.bf16.mxu0 0
    %1601 = vmatpush1.bf16.msra.mxu0 0
    %1602 = vmatprep.mubr.bf16.mxu0 0
    %1603 = vmatmul.mubr.bf16.gmra.mrb[0].mxu0 %v1498
    %v1604 = vpop.f32.mrb[0].mxu0
    %v1605 = vadd.f32 %v1520, %v1604
    %v1606 = vpop.f32.mrb[0].mxu0
    %v1607 = vpop.f32.mrb[0].mxu0
    %v1608 = vpop.f32.mrb[0].mxu0
    %1609 = vdwg.mxu0
    %v1610 = vmax.f32 %v1605, 0.0
    %v1611 = vld [vmem:[%s11] sm:$0x1]
    %1612 = vmatprep.subr.mxu0 0.0
    %1613 = vmatpush1.xpose.msra.mxu0 %v1610
    %1614 = vmatprep.subr.mxu0 0.0
    %1615 = vmatpush1.xpose.msra.mxu0 0.0
    %1616 = vmatprep.subr.mxu0 0.0
    %1617 = vmatpush1.xpose.msra.mxu0 0.0
    %1618 = vmatprep.subr.mxu0 0.0
    %1619 = vmatpush1.xpose.msra.mxu0 0.0
    %1620 = vmatprep.subr.mxu0 0.0
    %1621 = vmatpush1.xpose.msra.mxu0 0.0
    %1622 = vmatprep.subr.mxu0 0.0
    %1623 = vmatpush1.xpose.msra.mxu0 0.0
    %1624 = vmatprep.subr.mxu0 0.0
    %1625 = vmatpush1.xpose.msra.mxu0 0.0
    %1626 = vmatprep.subr.mxu0 0.0
    %1627 = vmatpush1.xpose.msra.mxu0 0.0
    %1628 = vmatprep.subr.mxu0 0.0
    %1629 = vmatpush1.xpose.msra.mxu0 0.0
    %1630 = vmatprep.subr.mxu0 0.0
    %1631 = vmatpush1.xpose.msra.mxu0 0.0
    %1632 = vmatprep.subr.mxu0 0.0
    %1633 = vmatpush1.xpose.msra.mxu0 0.0
    %1634 = vmatprep.subr.mxu0 0.0
    %1635 = vmatpush1.xpose.msra.mxu0 0.0
    %1636 = vmatprep.subr.mxu0 0.0
    %1637 = vmatpush1.xpose.msra.mxu0 0.0
    %1638 = vmatprep.subr.mxu0 0.0
    %1639 = vmatpush1.xpose.msra.mxu0 0.0
    %1640 = vmatprep.subr.mxu0 0.0
    %1641 = vmatpush1.xpose.msra.mxu0 0.0
    %1642 = vmatprep.subr.mxu0 0.0
    %1643 = vmatpush1.xpose.msra.mxu0 0.0
    %1644 = vmatprep.subr.mxu0 0.0
    %1645 = vmatpush1.xpose.msra.mxu0 0.0
    %1646 = vmatprep.subr.mxu0 0.0
    %1647 = vmatpush1.xpose.msra.mxu0 0.0
    %1648 = vmatprep.subr.mxu0 0.0
    %1649 = vmatpush1.xpose.msra.mxu0 0.0
    %1650 = vmatprep.subr.mxu0 0.0
    %1651 = vmatpush1.xpose.msra.mxu0 0.0
    %1652 = vmatprep.subr.mxu0 0.0
    %1653 = vmatpush1.xpose.msra.mxu0 0.0
    %1654 = vmatprep.subr.mxu0 0.0
    %1655 = vmatpush1.xpose.msra.mxu0 0.0
    %1656 = vmatprep.subr.mxu0 0.0
    %1657 = vmatpush1.xpose.msra.mxu0 0.0
    %1658 = vmatprep.subr.mxu0 0.0
    %1659 = vmatpush1.xpose.msra.mxu0 0.0
    %1660 = vmatprep.subr.mxu0 0.0
    %1661 = vmatpush1.xpose.msra.mxu0 0.0
    %1662 = vmatprep.subr.mxu0 0.0
    %1663 = vmatpush1.xpose.msra.mxu0 0.0
    %1664 = vmatprep.subr.mxu0 0.0
    %1665 = vmatpush1.xpose.msra.mxu0 0.0
    %1666 = vmatprep.subr.mxu0 0.0
    %1667 = vmatpush1.xpose.msra.mxu0 0.0
    %1668 = vmatprep.subr.mxu0 0.0
    %1669 = vmatpush1.xpose.msra.mxu0 0.0
    %1670 = vmatprep.subr.mxu0 0.0
    %1671 = vmatpush1.xpose.msra.mxu0 0.0
    %1672 = vmatprep.subr.mxu0 0.0
    %1673 = vmatpush1.xpose.msra.mxu0 0.0
    %1674 = vmatprep.subr.mxu0 0.0
    %1675 = vmatpush1.xpose.msra.mxu0 0.0
    %1676 = vmatprep.mubr.f32.mxu0 0.0
    %1677 = vmatmul.mubr.f32.gmra.mrb[0].mxu0 %v1611
    %v1678 = vpop.f32.mrb[0].mxu0
    %v1679 = vadd.f32 0.0, %v1678
    %v1680 = vpop.f32.mrb[0].mxu0
    %1681 = vdwg.mxu0
    %v1682 = vmul.f32 %v1679, 0.5
    %v1683 = vtanh.pop %v1682
    %v1684 = vmul.f32 %v1683, 0.5
    %v1685 = vadd.f32 %v1684, 0.5
    %vm1686 = vcmask 57344
    %1687 = vst.msk [vmem:[#allocation14] sm:$0x1] %vm1686, %v1685
    // Predicated region
    $region78: #{lstm_binary_classifier.1} parent=1 // pred_check
      _
    $region79: #{lstm_binary_classifier.1} parent=1 // pred_check_branch
      %1689 = sbr.rel (0) target = $region81
    $region80: #{lstm_binary_classifier.1} parent=1 // pred_region
      %s1691 = ssub.s32 16, 16
      %1692 = vsyncadd [#allocation4], %s1691
      %s1694 = sshll.u32 [#allocation14], 4
      %s1695 = int_to_ptr.vmem [resolvable:$true] %s1694
      %1697 = dma.vmem_to_hbm [thread:$0]  %s1695, 16, %s12, [#allocation4]
    $region81: #{lstm_binary_classifier.1} parent=1 // pred_fallthru
      _
    // Predicated region
    $region82: #{lstm_binary_classifier.1} parent=1 // pred_check
      _
    $region83: #{lstm_binary_classifier.1} parent=1 // pred_check_branch
      %1699 = sbr.rel (0) target = $region85
    $region84: #{lstm_binary_classifier.1} parent=1 // pred_region
      %1700 = dma.done [#allocation4], 16
    $region85: #{lstm_binary_classifier.1} parent=1 // pred_fallthru
      _
    %1701 = vsyncpa [#allocation3], 1
    %1702 = vsyncpa [#allocation6], 1
    %1703 = vsyncpa [#allocation9], 1
    %1704 = vsyncpa [#allocation12], 1
    %1705 = vsyncpa [#allocation4], 1

</llo_original>
